<compile_context>
chip_gen: v7x
topology: tpu7x:2x2x1
jax: 0.10.0
libtpu: 0.0.40
codegen_flags: <defaults>
</compile_context>

<pallas_src>
import functools

import jax
import jax.numpy as jnp
from jax import lax
from jax.experimental import pallas as pl
from jax.experimental.pallas import tpu as pltpu


def _round_up(x, m):
    return ((x + m - 1) // m) * m


def _model_kernel(x_ref, cw_ref, fw_ref, pw_ref, out_ref, slab_ref, *,
                  C, K, H, W, P, Wp, SUB, n_sub, pad):
    """One grid step = one block of n_sub*SUB images (independent of others).

    x_ref:   (B_blk, H*W)    raw images, flattened row-major (any float dtype).
    cw_ref:  (C, K*K + 1)    SMEM: conv tap weights + bias per channel.
    fw_ref:  (C + 1, OUT_P)  classifier weight rows + bias row (lane-padded).
    pw_ref:  (1, P_ext)      pool weights: 1/(H*W) at valid conv-output
                             positions of the flattened padded grid, 0 elsewhere.
    out_ref: (B_blk, OUT_P)  logits (lane-padded).
    slab_ref:(SUB, P_ext)    VMEM scratch: zero-framed padded image slab.
    """
    KK = K * K
    OUT_P = fw_ref.shape[1]

    # Zero the slab once per grid step: the padded frame / tail stays zero for
    # every sub-batch (only the valid pixels are overwritten below), so pad-row
    # conv garbage is finite and killed by the pool mask.
    slab_ref[...] = jnp.zeros_like(slab_ref)

    fw = fw_ref[...]                                   # (C+1, OUT_P)
    pwv = pw_ref[:, :P]                                # (1, P) mask * 1/(H*W)
    bias_tile = jnp.broadcast_to(fw[C:C + 1, :], (SUB, OUT_P))   # hoisted

    def sub_body(b0):
        # ---- build zero-framed padded slab for this sub-batch (VMEM only;
        # the input is DMA'd from HBM exactly once, no wrapper pre-pass) ----
        for h in range(H):
            slab_ref[:, pl.ds((h + pad) * Wp + pad, W)] = (
                x_ref[pl.ds(b0, SUB), pl.ds(h * W, W)].astype(jnp.float32))

        # ---- KxK conv taps: static lane-offset views of the slab ----
        patches = [slab_ref[:, pl.ds(dy * Wp + dx, P)]
                   for dy in range(K) for dx in range(K)]        # KK x (SUB,P)

        # ---- per-channel scalar-splat FMAs (pure VALU, no sublane bcast of
        # the patch; register footprint is only one (SUB,P) acc at a time) ----
        logits = bias_tile
        pooled_cols = []
        for c in range(C):
            acc = patches[0] * cw_ref[c, 0]
            for t in range(1, KK):
                acc = acc + patches[t] * cw_ref[c, t]
            acc = jnp.maximum(acc + cw_ref[c, KK], 0.0)          # bias + ReLU
            # masked global average pool (pw zeroes pad-frame garbage)
            pooled_c = jnp.sum(acc * pwv, axis=-1, keepdims=True)  # (SUB, 1)
            if C <= 32:
                # tiny classifier: VPU broadcast-FMA (skip MXU fill/drain)
                logits = logits + pooled_c * fw[c:c + 1, :]
            else:
                pooled_cols.append(pooled_c)
        if C > 32:
            pooled = jnp.concatenate(pooled_cols, axis=1)        # (SUB, C)
            logits = logits + jnp.dot(pooled, fw[:C, :],
                                      preferred_element_type=jnp.float32)

        out_ref[pl.ds(b0, SUB), :] = logits                      # lane-dense

    if n_sub <= 4:
        # short fixed trip-count: full unroll for LLO scheduler visibility
        for si in range(n_sub):
            sub_body(si * SUB)
    else:
        # long loop: rolled scf.for bounds live ranges / code size
        @pl.loop(0, n_sub)
        def _(s):
            sub_body(pl.multiple_of(s * SUB, SUB))


def custom_model_forward(x, params):
    """x: (N, 1, H, W) float (NCHW, grayscale). Returns (N, out_size) f32."""
    wc, bc, wf, bf = params            # (C,1,K,K), (C,), (out,C), (out,)
    N, Cin, H, W = x.shape
    assert Cin == 1, "input layer was converted to single-channel ('sum')"
    C = wc.shape[0]
    K = wc.shape[2]
    assert K == wc.shape[3] and K % 2 == 1, "layout assumes odd 'same' conv"
    out_size = wf.shape[0]

    pad = K // 2
    Hp, Wp = H + 2 * pad, W + 2 * pad
    P = Hp * Wp
    HW = H * W
    max_off = (K - 1) * Wp + (K - 1)
    P_ext = _round_up(P + max_off, 128)      # lane-padded flattened slab width
    OUT_P = _round_up(out_size, 128)         # lane-dense classifier output

    # ---- batch blocking --------------------------------------------------
    # Large blocks amortize the per-grid-step pipeline overhead; keep >=2
    # grid steps so the "parallel" batch axis can shard across both v7x TCs,
    # and cap the double-buffered input block against VMEM (v7x: 64 MiB phys).
    SUB = 8
    N_sub = _round_up(max(N, 1), SUB)
    if N_sub <= SUB:
        B_blk = SUB
    else:
        n_steps_target = max(2, -(-N_sub // 128))
        B_blk = _round_up(-(-N_sub // n_steps_target), SUB)
    blk_cap = max(SUB, ((8 * 1024 * 1024) // (HW * 4 * 2)) // SUB * SUB)
    B_blk = min(B_blk, blk_cap)
    N_pad = _round_up(N_sub, B_blk)
    n_sub = B_blk // SUB
    n_steps = N_pad // B_blk

    # ---- wrapper glue (no extra full-input HBM pass) ----------------------
    x_flat = x.reshape(N, HW)                # contiguous reshape: no copy
    if N_pad != N:
        x_flat = jnp.pad(x_flat, ((0, N_pad - N), (0, 0)))

    # conv taps as columns + bias column -> (C, K*K + 1), lives in SMEM
    cw = jnp.concatenate(
        [wc[:, 0, :, :].reshape(C, K * K).astype(jnp.float32),
         bc.reshape(C, 1).astype(jnp.float32)], axis=1)

    # classifier weights (lane-padded) + bias row -> (C + 1, OUT_P)
    wf_p = jnp.zeros((C, OUT_P), jnp.float32).at[:, :out_size].set(
        wf.T.astype(jnp.float32))
    bf_p = jnp.zeros((1, OUT_P), jnp.float32).at[:, :out_size].set(
        bf.astype(jnp.float32)[None, :])
    fwb = jnp.concatenate([wf_p, bf_p], axis=0)

    # pool weights over flattened padded conv-output positions
    pw = jnp.zeros((Hp, Wp), jnp.float32).at[:H, :W].set(1.0 / (H * W))
    pw = jnp.pad(pw.reshape(1, P), ((0, 0), (0, P_ext - P)))

    kernel = functools.partial(_model_kernel, C=C, K=K, H=H, W=W, P=P, Wp=Wp,
                               SUB=SUB, n_sub=n_sub, pad=pad)

    out = pl.pallas_call(
        kernel,
        out_shape=jax.ShapeDtypeStruct((N_pad, OUT_P), jnp.float32),
        grid_spec=pltpu.PrefetchScalarGridSpec(
            num_scalar_prefetch=0,
            grid=(n_steps,),
            in_specs=[
                pl.BlockSpec((B_blk, HW), lambda i: (i, 0)),
                pl.BlockSpec(memory_space=pltpu.MemorySpace.SMEM),   # conv w+b
                pl.BlockSpec((C + 1, OUT_P), lambda i: (0, 0)),
                pl.BlockSpec((1, P_ext), lambda i: (0, 0)),
            ],
            out_specs=pl.BlockSpec((B_blk, OUT_P), lambda i: (i, 0)),
            scratch_shapes=[pltpu.VMEM((SUB, P_ext), jnp.float32)],
        ),
        compiler_params=pltpu.CompilerParams(
            dimension_semantics=("parallel",)),
    )(x_flat, cw, fwb, pw)

    return out[:N, :out_size]


def reference_forward(x, params):
    """Pure-JAX reference (mirrors the PyTorch forward)."""
    wc, bc, wf, bf = params
    K = wc.shape[2]
    p = K // 2
    y = lax.conv_general_dilated(
        x.astype(jnp.float32), wc, window_strides=(1, 1),
        padding=((p, p), (p, p)),
        dimension_numbers=("NCHW", "OIHW", "NCHW"))
    y = y + bc[None, :, None, None]
    y = jnp.maximum(y, 0.0)
    pooled = jnp.mean(y, axis=(2, 3))
    return pooled @ wf.T + bf[None, :]


def init_params(key, channels, out_size, kernel=3):
    """Deterministic synthetic init mimicking _rgb_to_grey_input('sum')."""
    k1, k2, k3, k4 = jax.random.split(key, 4)
    # Original (pretrained-style) RGB first conv: (C, 3, K, K)
    wc_rgb = jax.random.normal(k1, (channels, 3, kernel, kernel),
                               jnp.float32) * 0.1
    # 'sum' aggregation over the RGB input dim -> (C, 1, K, K)
    wc = jnp.sum(wc_rgb, axis=1, keepdims=True)
    bc = jax.random.normal(k2, (channels,), jnp.float32) * 0.1
    wf = jax.random.normal(k3, (out_size, channels), jnp.float32) * 0.1
    bf = jax.random.normal(k4, (out_size,), jnp.float32) * 0.1
    return wc, bc, wf, bf


if __name__ == "__main__":
    H, W = 16, 16
    channels, out_size = 8, 10

    key = jax.random.PRNGKey(0)
    kx, kp = jax.random.split(key)
    params = init_params(kp, channels, out_size)

    # Primary check (small shapes consistent with the module).
    N = 2
    x = jax.random.normal(kx, (N, 1, H, W), jnp.float32)
    out = jax.block_until_ready(custom_model_forward(x, params))
    ref = reference_forward(x, params)
    assert out.shape == (N, out_size)
    assert jnp.allclose(out, ref, atol=1e-4, rtol=1e-4), (out, ref)

    # Extra checks exercising batch padding, multi-sub-batch (unrolled) and
    # multi-grid-step paths, and the rolled in-kernel sub-batch loop.
    for N2 in (37, 200):
        x2 = jax.random.normal(jax.random.PRNGKey(N2), (N2, 1, H, W),
                               jnp.float32)
        out2 = jax.block_until_ready(custom_model_forward(x2, params))
        ref2 = reference_forward(x2, params)
        assert out2.shape == (N2, out_size)
        assert jnp.allclose(out2, ref2, atol=1e-4, rtol=1e-4)

    print("KERNEL_OK")
</pallas_src>

<mosaic_0001>
module attributes {stable_mosaic.version = 11 : i64} {
  func.func @_model_kernel(%arg0: i32, %arg1: memref<8x256xf32, #tpu.memory_space<vmem>>, %arg2: memref<8x10xf32, #tpu.memory_space<smem>>, %arg3: memref<9x128xf32, #tpu.memory_space<vmem>>, %arg4: memref<1x384xf32, #tpu.memory_space<vmem>>, %arg5: memref<8x128xf32, #tpu.memory_space<vmem>>, %arg6: memref<8x384xf32, #tpu.memory_space<vmem>>) attributes {dimension_semantics = [#tpu.dimension_semantics<parallel>], iteration_bounds = array<i64: 1>, scalar_prefetch = 0 : i64, scratch_operands = 1 : i64, tpu.core_type = #tpu.core_type<tc>, window_params = [{transform_indices = @transform_0, window_bounds = array<i64: 8, 256>}, {transform_indices = @transform_1, window_bounds = array<i64: 8, 10>}, {pipeline_mode = #tpu.pipeline_mode<synchronous>, transform_indices = @transform_2, window_bounds = array<i64: 9, 128>}, {pipeline_mode = #tpu.pipeline_mode<synchronous>, transform_indices = @transform_3, window_bounds = array<i64: 1, 384>}, {transform_indices = @transform_4, window_bounds = array<i64: 8, 128>}]} {
    %cst = arith.constant 0.000000e+00 : f32
    %0 = vector.broadcast %cst : f32 to vector<8x384xf32>
    %c0 = arith.constant 0 : index
    %c0_0 = arith.constant 0 : index
    %1 = vector.load %arg6[%c0, %c0_0] : memref<8x384xf32, #tpu.memory_space<vmem>>, vector<8x384xf32>
    tpu.vector_store %arg6[%c0, %c0_0], %0 {strides = array<i32>} : memref<8x384xf32, #tpu.memory_space<vmem>>, vector<8x384xf32>,
    %c0_1 = arith.constant 0 : index
    %c0_2 = arith.constant 0 : index
    %2 = vector.load %arg3[%c0_1, %c0_2] : memref<9x128xf32, #tpu.memory_space<vmem>>, vector<9x128xf32>
    %c0_3 = arith.constant 0 : index
    %c0_4 = arith.constant 0 : index
    %3 = vector.load %arg4[%c0_3, %c0_4] : memref<1x384xf32, #tpu.memory_space<vmem>>, vector<1x324xf32>
    %4 = vector.extract_strided_slice %2 {offsets = [8, 0], sizes = [1, 128], strides = [1, 1]} : vector<9x128xf32> to vector<1x128xf32>
    %5 = vector.shape_cast %4 : vector<1x128xf32> to vector<1x128xf32>
    %6 = vector.broadcast %5 : vector<1x128xf32> to vector<8x128xf32>
    %c0_5 = arith.constant 0 : index
    %c0_6 = arith.constant 0 : index
    %7 = vector.load %arg1[%c0_5, %c0_6] : memref<8x256xf32, #tpu.memory_space<vmem>>, vector<8x16xf32>
    %c0_7 = arith.constant 0 : index
    %c19 = arith.constant 19 : index
    %8 = vector.load %arg6[%c0_7, %c19] : memref<8x384xf32, #tpu.memory_space<vmem>>, vector<8x16xf32>
    tpu.vector_store %arg6[%c0_7, %c19], %7 {strides = array<i32>} : memref<8x384xf32, #tpu.memory_space<vmem>>, vector<8x16xf32>,
    %c0_8 = arith.constant 0 : index
    %c16 = arith.constant 16 : index
    %9 = vector.load %arg1[%c0_8, %c16] : memref<8x256xf32, #tpu.memory_space<vmem>>, vector<8x16xf32>
    %c0_9 = arith.constant 0 : index
    %c37 = arith.constant 37 : index
    %10 = vector.load %arg6[%c0_9, %c37] : memref<8x384xf32, #tpu.memory_space<vmem>>, vector<8x16xf32>
    tpu.vector_store %arg6[%c0_9, %c37], %9 {strides = array<i32>} : memref<8x384xf32, #tpu.memory_space<vmem>>, vector<8x16xf32>,
    %c0_10 = arith.constant 0 : index
    %c32 = arith.constant 32 : index
    %11 = vector.load %arg1[%c0_10, %c32] : memref<8x256xf32, #tpu.memory_space<vmem>>, vector<8x16xf32>
    %c0_11 = arith.constant 0 : index
    %c55 = arith.constant 55 : index
    %12 = vector.load %arg6[%c0_11, %c55] : memref<8x384xf32, #tpu.memory_space<vmem>>, vector<8x16xf32>
    tpu.vector_store %arg6[%c0_11, %c55], %11 {strides = array<i32>} : memref<8x384xf32, #tpu.memory_space<vmem>>, vector<8x16xf32>,
    %c0_12 = arith.constant 0 : index
    %c48 = arith.constant 48 : index
    %13 = vector.load %arg1[%c0_12, %c48] : memref<8x256xf32, #tpu.memory_space<vmem>>, vector<8x16xf32>
    %c0_13 = arith.constant 0 : index
    %c73 = arith.constant 73 : index
    %14 = vector.load %arg6[%c0_13, %c73] : memref<8x384xf32, #tpu.memory_space<vmem>>, vector<8x16xf32>
    tpu.vector_store %arg6[%c0_13, %c73], %13 {strides = array<i32>} : memref<8x384xf32, #tpu.memory_space<vmem>>, vector<8x16xf32>,
    %c0_14 = arith.constant 0 : index
    %c64 = arith.constant 64 : index
    %15 = vector.load %arg1[%c0_14, %c64] : memref<8x256xf32, #tpu.memory_space<vmem>>, vector<8x16xf32>
    %c0_15 = arith.constant 0 : index
    %c91 = arith.constant 91 : index
    %16 = vector.load %arg6[%c0_15, %c91] : memref<8x384xf32, #tpu.memory_space<vmem>>, vector<8x16xf32>
    tpu.vector_store %arg6[%c0_15, %c91], %15 {strides = array<i32>} : memref<8x384xf32, #tpu.memory_space<vmem>>, vector<8x16xf32>,
    %c0_16 = arith.constant 0 : index
    %c80 = arith.constant 80 : index
    %17 = vector.load %arg1[%c0_16, %c80] : memref<8x256xf32, #tpu.memory_space<vmem>>, vector<8x16xf32>
    %c0_17 = arith.constant 0 : index
    %c109 = arith.constant 109 : index
    %18 = vector.load %arg6[%c0_17, %c109] : memref<8x384xf32, #tpu.memory_space<vmem>>, vector<8x16xf32>
    tpu.vector_store %arg6[%c0_17, %c109], %17 {strides = array<i32>} : memref<8x384xf32, #tpu.memory_space<vmem>>, vector<8x16xf32>,
    %c0_18 = arith.constant 0 : index
    %c96 = arith.constant 96 : index
    %19 = vector.load %arg1[%c0_18, %c96] : memref<8x256xf32, #tpu.memory_space<vmem>>, vector<8x16xf32>
    %c0_19 = arith.constant 0 : index
    %c127 = arith.constant 127 : index
    %20 = vector.load %arg6[%c0_19, %c127] : memref<8x384xf32, #tpu.memory_space<vmem>>, vector<8x16xf32>
    tpu.vector_store %arg6[%c0_19, %c127], %19 {strides = array<i32>} : memref<8x384xf32, #tpu.memory_space<vmem>>, vector<8x16xf32>,
    %c0_20 = arith.constant 0 : index
    %c112 = arith.constant 112 : index
    %21 = vector.load %arg1[%c0_20, %c112] : memref<8x256xf32, #tpu.memory_space<vmem>>, vector<8x16xf32>
    %c0_21 = arith.constant 0 : index
    %c145 = arith.constant 145 : index
    %22 = vector.load %arg6[%c0_21, %c145] : memref<8x384xf32, #tpu.memory_space<vmem>>, vector<8x16xf32>
    tpu.vector_store %arg6[%c0_21, %c145], %21 {strides = array<i32>} : memref<8x384xf32, #tpu.memory_space<vmem>>, vector<8x16xf32>,
    %c0_22 = arith.constant 0 : index
    %c128 = arith.constant 128 : index
    %23 = vector.load %arg1[%c0_22, %c128] : memref<8x256xf32, #tpu.memory_space<vmem>>, vector<8x16xf32>
    %c0_23 = arith.constant 0 : index
    %c163 = arith.constant 163 : index
    %24 = vector.load %arg6[%c0_23, %c163] : memref<8x384xf32, #tpu.memory_space<vmem>>, vector<8x16xf32>
    tpu.vector_store %arg6[%c0_23, %c163], %23 {strides = array<i32>} : memref<8x384xf32, #tpu.memory_space<vmem>>, vector<8x16xf32>,
    %c0_24 = arith.constant 0 : index
    %c144 = arith.constant 144 : index
    %25 = vector.load %arg1[%c0_24, %c144] : memref<8x256xf32, #tpu.memory_space<vmem>>, vector<8x16xf32>
    %c0_25 = arith.constant 0 : index
    %c181 = arith.constant 181 : index
    %26 = vector.load %arg6[%c0_25, %c181] : memref<8x384xf32, #tpu.memory_space<vmem>>, vector<8x16xf32>
    tpu.vector_store %arg6[%c0_25, %c181], %25 {strides = array<i32>} : memref<8x384xf32, #tpu.memory_space<vmem>>, vector<8x16xf32>,
    %c0_26 = arith.constant 0 : index
    %c160 = arith.constant 160 : index
    %27 = vector.load %arg1[%c0_26, %c160] : memref<8x256xf32, #tpu.memory_space<vmem>>, vector<8x16xf32>
    %c0_27 = arith.constant 0 : index
    %c199 = arith.constant 199 : index
    %28 = vector.load %arg6[%c0_27, %c199] : memref<8x384xf32, #tpu.memory_space<vmem>>, vector<8x16xf32>
    tpu.vector_store %arg6[%c0_27, %c199], %27 {strides = array<i32>} : memref<8x384xf32, #tpu.memory_space<vmem>>, vector<8x16xf32>,
    %c0_28 = arith.constant 0 : index
    %c176 = arith.constant 176 : index
    %29 = vector.load %arg1[%c0_28, %c176] : memref<8x256xf32, #tpu.memory_space<vmem>>, vector<8x16xf32>
    %c0_29 = arith.constant 0 : index
    %c217 = arith.constant 217 : index
    %30 = vector.load %arg6[%c0_29, %c217] : memref<8x384xf32, #tpu.memory_space<vmem>>, vector<8x16xf32>
    tpu.vector_store %arg6[%c0_29, %c217], %29 {strides = array<i32>} : memref<8x384xf32, #tpu.memory_space<vmem>>, vector<8x16xf32>,
    %c0_30 = arith.constant 0 : index
    %c192 = arith.constant 192 : index
    %31 = vector.load %arg1[%c0_30, %c192] : memref<8x256xf32, #tpu.memory_space<vmem>>, vector<8x16xf32>
    %c0_31 = arith.constant 0 : index
    %c235 = arith.constant 235 : index
    %32 = vector.load %arg6[%c0_31, %c235] : memref<8x384xf32, #tpu.memory_space<vmem>>, vector<8x16xf32>
    tpu.vector_store %arg6[%c0_31, %c235], %31 {strides = array<i32>} : memref<8x384xf32, #tpu.memory_space<vmem>>, vector<8x16xf32>,
    %c0_32 = arith.constant 0 : index
    %c208 = arith.constant 208 : index
    %33 = vector.load %arg1[%c0_32, %c208] : memref<8x256xf32, #tpu.memory_space<vmem>>, vector<8x16xf32>
    %c0_33 = arith.constant 0 : index
    %c253 = arith.constant 253 : index
    %34 = vector.load %arg6[%c0_33, %c253] : memref<8x384xf32, #tpu.memory_space<vmem>>, vector<8x16xf32>
    tpu.vector_store %arg6[%c0_33, %c253], %33 {strides = array<i32>} : memref<8x384xf32, #tpu.memory_space<vmem>>, vector<8x16xf32>,
    %c0_34 = arith.constant 0 : index
    %c224 = arith.constant 224 : index
    %35 = vector.load %arg1[%c0_34, %c224] : memref<8x256xf32, #tpu.memory_space<vmem>>, vector<8x16xf32>
    %c0_35 = arith.constant 0 : index
    %c271 = arith.constant 271 : index
    %36 = vector.load %arg6[%c0_35, %c271] : memref<8x384xf32, #tpu.memory_space<vmem>>, vector<8x16xf32>
    tpu.vector_store %arg6[%c0_35, %c271], %35 {strides = array<i32>} : memref<8x384xf32, #tpu.memory_space<vmem>>, vector<8x16xf32>,
    %c0_36 = arith.constant 0 : index
    %c240 = arith.constant 240 : index
    %37 = vector.load %arg1[%c0_36, %c240] : memref<8x256xf32, #tpu.memory_space<vmem>>, vector<8x16xf32>
    %c0_37 = arith.constant 0 : index
    %c289 = arith.constant 289 : index
    %38 = vector.load %arg6[%c0_37, %c289] : memref<8x384xf32, #tpu.memory_space<vmem>>, vector<8x16xf32>
    tpu.vector_store %arg6[%c0_37, %c289], %37 {strides = array<i32>} : memref<8x384xf32, #tpu.memory_space<vmem>>, vector<8x16xf32>,
    %c0_38 = arith.constant 0 : index
    %c0_39 = arith.constant 0 : index
    %39 = vector.load %arg6[%c0_38, %c0_39] : memref<8x384xf32, #tpu.memory_space<vmem>>, vector<8x324xf32>
    %c0_40 = arith.constant 0 : index
    %c1 = arith.constant 1 : index
    %40 = vector.load %arg6[%c0_40, %c1] : memref<8x384xf32, #tpu.memory_space<vmem>>, vector<8x324xf32>
    %c0_41 = arith.constant 0 : index
    %c2 = arith.constant 2 : index
    %41 = vector.load %arg6[%c0_41, %c2] : memref<8x384xf32, #tpu.memory_space<vmem>>, vector<8x324xf32>
    %c0_42 = arith.constant 0 : index
    %c18 = arith.constant 18 : index
    %42 = vector.load %arg6[%c0_42, %c18] : memref<8x384xf32, #tpu.memory_space<vmem>>, vector<8x324xf32>
    %c0_43 = arith.constant 0 : index
    %c19_44 = arith.constant 19 : index
    %43 = vector.load %arg6[%c0_43, %c19_44] : memref<8x384xf32, #tpu.memory_space<vmem>>, vector<8x324xf32>
    %c0_45 = arith.constant 0 : index
    %c20 = arith.constant 20 : index
    %44 = vector.load %arg6[%c0_45, %c20] : memref<8x384xf32, #tpu.memory_space<vmem>>, vector<8x324xf32>
    %c0_46 = arith.constant 0 : index
    %c36 = arith.constant 36 : index
    %45 = vector.load %arg6[%c0_46, %c36] : memref<8x384xf32, #tpu.memory_space<vmem>>, vector<8x324xf32>
    %c0_47 = arith.constant 0 : index
    %c37_48 = arith.constant 37 : index
    %46 = vector.load %arg6[%c0_47, %c37_48] : memref<8x384xf32, #tpu.memory_space<vmem>>, vector<8x324xf32>
    %c0_49 = arith.constant 0 : index
    %c38 = arith.constant 38 : index
    %47 = vector.load %arg6[%c0_49, %c38] : memref<8x384xf32, #tpu.memory_space<vmem>>, vector<8x324xf32>
    %c0_50 = arith.constant 0 : index
    %c0_51 = arith.constant 0 : index
    %48 = memref.load %arg2[%c0_50, %c0_51] : memref<8x10xf32, #tpu.memory_space<smem>>
    %49 = vector.broadcast %48 : f32 to vector<8x324xf32>
    %50 = arith.mulf %39, %49 : vector<8x324xf32>
    %c0_52 = arith.constant 0 : index
    %c1_53 = arith.constant 1 : index
    %51 = memref.load %arg2[%c0_52, %c1_53] : memref<8x10xf32, #tpu.memory_space<smem>>
    %52 = vector.broadcast %51 : f32 to vector<8x324xf32>
    %53 = arith.mulf %40, %52 : vector<8x324xf32>
    %54 = arith.addf %50, %53 : vector<8x324xf32>
    %c0_54 = arith.constant 0 : index
    %c2_55 = arith.constant 2 : index
    %55 = memref.load %arg2[%c0_54, %c2_55] : memref<8x10xf32, #tpu.memory_space<smem>>
    %56 = vector.broadcast %55 : f32 to vector<8x324xf32>
    %57 = arith.mulf %41, %56 : vector<8x324xf32>
    %58 = arith.addf %54, %57 : vector<8x324xf32>
    %c0_56 = arith.constant 0 : index
    %c3 = arith.constant 3 : index
    %59 = memref.load %arg2[%c0_56, %c3] : memref<8x10xf32, #tpu.memory_space<smem>>
    %60 = vector.broadcast %59 : f32 to vector<8x324xf32>
    %61 = arith.mulf %42, %60 : vector<8x324xf32>
    %62 = arith.addf %58, %61 : vector<8x324xf32>
    %c0_57 = arith.constant 0 : index
    %c4 = arith.constant 4 : index
    %63 = memref.load %arg2[%c0_57, %c4] : memref<8x10xf32, #tpu.memory_space<smem>>
    %64 = vector.broadcast %63 : f32 to vector<8x324xf32>
    %65 = arith.mulf %43, %64 : vector<8x324xf32>
    %66 = arith.addf %62, %65 : vector<8x324xf32>
    %c0_58 = arith.constant 0 : index
    %c5 = arith.constant 5 : index
    %67 = memref.load %arg2[%c0_58, %c5] : memref<8x10xf32, #tpu.memory_space<smem>>
    %68 = vector.broadcast %67 : f32 to vector<8x324xf32>
    %69 = arith.mulf %44, %68 : vector<8x324xf32>
    %70 = arith.addf %66, %69 : vector<8x324xf32>
    %c0_59 = arith.constant 0 : index
    %c6 = arith.constant 6 : index
    %71 = memref.load %arg2[%c0_59, %c6] : memref<8x10xf32, #tpu.memory_space<smem>>
    %72 = vector.broadcast %71 : f32 to vector<8x324xf32>
    %73 = arith.mulf %45, %72 : vector<8x324xf32>
    %74 = arith.addf %70, %73 : vector<8x324xf32>
    %c0_60 = arith.constant 0 : index
    %c7 = arith.constant 7 : index
    %75 = memref.load %arg2[%c0_60, %c7] : memref<8x10xf32, #tpu.memory_space<smem>>
    %76 = vector.broadcast %75 : f32 to vector<8x324xf32>
    %77 = arith.mulf %46, %76 : vector<8x324xf32>
    %78 = arith.addf %74, %77 : vector<8x324xf32>
    %c0_61 = arith.constant 0 : index
    %c8 = arith.constant 8 : index
    %79 = memref.load %arg2[%c0_61, %c8] : memref<8x10xf32, #tpu.memory_space<smem>>
    %80 = vector.broadcast %79 : f32 to vector<8x324xf32>
    %81 = arith.mulf %47, %80 : vector<8x324xf32>
    %82 = arith.addf %78, %81 : vector<8x324xf32>
    %c0_62 = arith.constant 0 : index
    %c9 = arith.constant 9 : index
    %83 = memref.load %arg2[%c0_62, %c9] : memref<8x10xf32, #tpu.memory_space<smem>>
    %84 = vector.broadcast %83 : f32 to vector<8x324xf32>
    %85 = arith.addf %82, %84 : vector<8x324xf32>
    %cst_63 = arith.constant 0.000000e+00 : f32
    %86 = vector.broadcast %cst_63 : f32 to vector<8x324xf32>
    %87 = arith.maximumf %85, %86 : vector<8x324xf32>
    %88 = vector.broadcast %3 : vector<1x324xf32> to vector<8x324xf32>
    %89 = arith.mulf %87, %88 : vector<8x324xf32>
    %cst_64 = arith.constant dense<0.000000e+00> : vector<8xf32>
    %90 = vector.multi_reduction <add>, %89, %cst_64 [1] : vector<8x324xf32> to vector<8xf32>
    %91 = vector.shape_cast %90 : vector<8xf32> to vector<8x1xf32>
    %92 = vector.extract_strided_slice %2 {offsets = [0, 0], sizes = [1, 128], strides = [1, 1]} : vector<9x128xf32> to vector<1x128xf32>
    %93 = vector.broadcast %91 : vector<8x1xf32> to vector<8x128xf32>
    %94 = vector.broadcast %92 : vector<1x128xf32> to vector<8x128xf32>
    %95 = arith.mulf %93, %94 : vector<8x128xf32>
    %96 = arith.addf %6, %95 : vector<8x128xf32>
    %c1_65 = arith.constant 1 : index
    %c0_66 = arith.constant 0 : index
    %97 = memref.load %arg2[%c1_65, %c0_66] : memref<8x10xf32, #tpu.memory_space<smem>>
    %98 = vector.broadcast %97 : f32 to vector<8x324xf32>
    %99 = arith.mulf %39, %98 : vector<8x324xf32>
    %c1_67 = arith.constant 1 : index
    %c1_68 = arith.constant 1 : index
    %100 = memref.load %arg2[%c1_67, %c1_68] : memref<8x10xf32, #tpu.memory_space<smem>>
    %101 = vector.broadcast %100 : f32 to vector<8x324xf32>
    %102 = arith.mulf %40, %101 : vector<8x324xf32>
    %103 = arith.addf %99, %102 : vector<8x324xf32>
    %c1_69 = arith.constant 1 : index
    %c2_70 = arith.constant 2 : index
    %104 = memref.load %arg2[%c1_69, %c2_70] : memref<8x10xf32, #tpu.memory_space<smem>>
    %105 = vector.broadcast %104 : f32 to vector<8x324xf32>
    %106 = arith.mulf %41, %105 : vector<8x324xf32>
    %107 = arith.addf %103, %106 : vector<8x324xf32>
    %c1_71 = arith.constant 1 : index
    %c3_72 = arith.constant 3 : index
    %108 = memref.load %arg2[%c1_71, %c3_72] : memref<8x10xf32, #tpu.memory_space<smem>>
    %109 = vector.broadcast %108 : f32 to vector<8x324xf32>
    %110 = arith.mulf %42, %109 : vector<8x324xf32>
    %111 = arith.addf %107, %110 : vector<8x324xf32>
    %c1_73 = arith.constant 1 : index
    %c4_74 = arith.constant 4 : index
    %112 = memref.load %arg2[%c1_73, %c4_74] : memref<8x10xf32, #tpu.memory_space<smem>>
    %113 = vector.broadcast %112 : f32 to vector<8x324xf32>
    %114 = arith.mulf %43, %113 : vector<8x324xf32>
    %115 = arith.addf %111, %114 : vector<8x324xf32>
    %c1_75 = arith.constant 1 : index
    %c5_76 = arith.constant 5 : index
    %116 = memref.load %arg2[%c1_75, %c5_76] : memref<8x10xf32, #tpu.memory_space<smem>>
    %117 = vector.broadcast %116 : f32 to vector<8x324xf32>
    %118 = arith.mulf %44, %117 : vector<8x324xf32>
    %119 = arith.addf %115, %118 : vector<8x324xf32>
    %c1_77 = arith.constant 1 : index
    %c6_78 = arith.constant 6 : index
    %120 = memref.load %arg2[%c1_77, %c6_78] : memref<8x10xf32, #tpu.memory_space<smem>>
    %121 = vector.broadcast %120 : f32 to vector<8x324xf32>
    %122 = arith.mulf %45, %121 : vector<8x324xf32>
    %123 = arith.addf %119, %122 : vector<8x324xf32>
    %c1_79 = arith.constant 1 : index
    %c7_80 = arith.constant 7 : index
    %124 = memref.load %arg2[%c1_79, %c7_80] : memref<8x10xf32, #tpu.memory_space<smem>>
    %125 = vector.broadcast %124 : f32 to vector<8x324xf32>
    %126 = arith.mulf %46, %125 : vector<8x324xf32>
    %127 = arith.addf %123, %126 : vector<8x324xf32>
    %c1_81 = arith.constant 1 : index
    %c8_82 = arith.constant 8 : index
    %128 = memref.load %arg2[%c1_81, %c8_82] : memref<8x10xf32, #tpu.memory_space<smem>>
    %129 = vector.broadcast %128 : f32 to vector<8x324xf32>
    %130 = arith.mulf %47, %129 : vector<8x324xf32>
    %131 = arith.addf %127, %130 : vector<8x324xf32>
    %c1_83 = arith.constant 1 : index
    %c9_84 = arith.constant 9 : index
    %132 = memref.load %arg2[%c1_83, %c9_84] : memref<8x10xf32, #tpu.memory_space<smem>>
    %133 = vector.broadcast %132 : f32 to vector<8x324xf32>
    %134 = arith.addf %131, %133 : vector<8x324xf32>
    %cst_85 = arith.constant 0.000000e+00 : f32
    %135 = vector.broadcast %cst_85 : f32 to vector<8x324xf32>
    %136 = arith.maximumf %134, %135 : vector<8x324xf32>
    %137 = vector.broadcast %3 : vector<1x324xf32> to vector<8x324xf32>
    %138 = arith.mulf %136, %137 : vector<8x324xf32>
    %cst_86 = arith.constant dense<0.000000e+00> : vector<8xf32>
    %139 = vector.multi_reduction <add>, %138, %cst_86 [1] : vector<8x324xf32> to vector<8xf32>
    %140 = vector.shape_cast %139 : vector<8xf32> to vector<8x1xf32>
    %141 = vector.extract_strided_slice %2 {offsets = [1, 0], sizes = [1, 128], strides = [1, 1]} : vector<9x128xf32> to vector<1x128xf32>
    %142 = vector.broadcast %140 : vector<8x1xf32> to vector<8x128xf32>
    %143 = vector.broadcast %141 : vector<1x128xf32> to vector<8x128xf32>
    %144 = arith.mulf %142, %143 : vector<8x128xf32>
    %145 = arith.addf %96, %144 : vector<8x128xf32>
    %c2_87 = arith.constant 2 : index
    %c0_88 = arith.constant 0 : index
    %146 = memref.load %arg2[%c2_87, %c0_88] : memref<8x10xf32, #tpu.memory_space<smem>>
    %147 = vector.broadcast %146 : f32 to vector<8x324xf32>
    %148 = arith.mulf %39, %147 : vector<8x324xf32>
    %c2_89 = arith.constant 2 : index
    %c1_90 = arith.constant 1 : index
    %149 = memref.load %arg2[%c2_89, %c1_90] : memref<8x10xf32, #tpu.memory_space<smem>>
    %150 = vector.broadcast %149 : f32 to vector<8x324xf32>
    %151 = arith.mulf %40, %150 : vector<8x324xf32>
    %152 = arith.addf %148, %151 : vector<8x324xf32>
    %c2_91 = arith.constant 2 : index
    %c2_92 = arith.constant 2 : index
    %153 = memref.load %arg2[%c2_91, %c2_92] : memref<8x10xf32, #tpu.memory_space<smem>>
    %154 = vector.broadcast %153 : f32 to vector<8x324xf32>
    %155 = arith.mulf %41, %154 : vector<8x324xf32>
    %156 = arith.addf %152, %155 : vector<8x324xf32>
    %c2_93 = arith.constant 2 : index
    %c3_94 = arith.constant 3 : index
    %157 = memref.load %arg2[%c2_93, %c3_94] : memref<8x10xf32, #tpu.memory_space<smem>>
    %158 = vector.broadcast %157 : f32 to vector<8x324xf32>
    %159 = arith.mulf %42, %158 : vector<8x324xf32>
    %160 = arith.addf %156, %159 : vector<8x324xf32>
    %c2_95 = arith.constant 2 : index
    %c4_96 = arith.constant 4 : index
    %161 = memref.load %arg2[%c2_95, %c4_96] : memref<8x10xf32, #tpu.memory_space<smem>>
    %162 = vector.broadcast %161 : f32 to vector<8x324xf32>
    %163 = arith.mulf %43, %162 : vector<8x324xf32>
    %164 = arith.addf %160, %163 : vector<8x324xf32>
    %c2_97 = arith.constant 2 : index
    %c5_98 = arith.constant 5 : index
    %165 = memref.load %arg2[%c2_97, %c5_98] : memref<8x10xf32, #tpu.memory_space<smem>>
    %166 = vector.broadcast %165 : f32 to vector<8x324xf32>
    %167 = arith.mulf %44, %166 : vector<8x324xf32>
    %168 = arith.addf %164, %167 : vector<8x324xf32>
    %c2_99 = arith.constant 2 : index
    %c6_100 = arith.constant 6 : index
    %169 = memref.load %arg2[%c2_99, %c6_100] : memref<8x10xf32, #tpu.memory_space<smem>>
    %170 = vector.broadcast %169 : f32 to vector<8x324xf32>
    %171 = arith.mulf %45, %170 : vector<8x324xf32>
    %172 = arith.addf %168, %171 : vector<8x324xf32>
    %c2_101 = arith.constant 2 : index
    %c7_102 = arith.constant 7 : index
    %173 = memref.load %arg2[%c2_101, %c7_102] : memref<8x10xf32, #tpu.memory_space<smem>>
    %174 = vector.broadcast %173 : f32 to vector<8x324xf32>
    %175 = arith.mulf %46, %174 : vector<8x324xf32>
    %176 = arith.addf %172, %175 : vector<8x324xf32>
    %c2_103 = arith.constant 2 : index
    %c8_104 = arith.constant 8 : index
    %177 = memref.load %arg2[%c2_103, %c8_104] : memref<8x10xf32, #tpu.memory_space<smem>>
    %178 = vector.broadcast %177 : f32 to vector<8x324xf32>
    %179 = arith.mulf %47, %178 : vector<8x324xf32>
    %180 = arith.addf %176, %179 : vector<8x324xf32>
    %c2_105 = arith.constant 2 : index
    %c9_106 = arith.constant 9 : index
    %181 = memref.load %arg2[%c2_105, %c9_106] : memref<8x10xf32, #tpu.memory_space<smem>>
    %182 = vector.broadcast %181 : f32 to vector<8x324xf32>
    %183 = arith.addf %180, %182 : vector<8x324xf32>
    %cst_107 = arith.constant 0.000000e+00 : f32
    %184 = vector.broadcast %cst_107 : f32 to vector<8x324xf32>
    %185 = arith.maximumf %183, %184 : vector<8x324xf32>
    %186 = vector.broadcast %3 : vector<1x324xf32> to vector<8x324xf32>
    %187 = arith.mulf %185, %186 : vector<8x324xf32>
    %cst_108 = arith.constant dense<0.000000e+00> : vector<8xf32>
    %188 = vector.multi_reduction <add>, %187, %cst_108 [1] : vector<8x324xf32> to vector<8xf32>
    %189 = vector.shape_cast %188 : vector<8xf32> to vector<8x1xf32>
    %190 = vector.extract_strided_slice %2 {offsets = [2, 0], sizes = [1, 128], strides = [1, 1]} : vector<9x128xf32> to vector<1x128xf32>
    %191 = vector.broadcast %189 : vector<8x1xf32> to vector<8x128xf32>
    %192 = vector.broadcast %190 : vector<1x128xf32> to vector<8x128xf32>
    %193 = arith.mulf %191, %192 : vector<8x128xf32>
    %194 = arith.addf %145, %193 : vector<8x128xf32>
    %c3_109 = arith.constant 3 : index
    %c0_110 = arith.constant 0 : index
    %195 = memref.load %arg2[%c3_109, %c0_110] : memref<8x10xf32, #tpu.memory_space<smem>>
    %196 = vector.broadcast %195 : f32 to vector<8x324xf32>
    %197 = arith.mulf %39, %196 : vector<8x324xf32>
    %c3_111 = arith.constant 3 : index
    %c1_112 = arith.constant 1 : index
    %198 = memref.load %arg2[%c3_111, %c1_112] : memref<8x10xf32, #tpu.memory_space<smem>>
    %199 = vector.broadcast %198 : f32 to vector<8x324xf32>
    %200 = arith.mulf %40, %199 : vector<8x324xf32>
    %201 = arith.addf %197, %200 : vector<8x324xf32>
    %c3_113 = arith.constant 3 : index
    %c2_114 = arith.constant 2 : index
    %202 = memref.load %arg2[%c3_113, %c2_114] : memref<8x10xf32, #tpu.memory_space<smem>>
    %203 = vector.broadcast %202 : f32 to vector<8x324xf32>
    %204 = arith.mulf %41, %203 : vector<8x324xf32>
    %205 = arith.addf %201, %204 : vector<8x324xf32>
    %c3_115 = arith.constant 3 : index
    %c3_116 = arith.constant 3 : index
    %206 = memref.load %arg2[%c3_115, %c3_116] : memref<8x10xf32, #tpu.memory_space<smem>>
    %207 = vector.broadcast %206 : f32 to vector<8x324xf32>
    %208 = arith.mulf %42, %207 : vector<8x324xf32>
    %209 = arith.addf %205, %208 : vector<8x324xf32>
    %c3_117 = arith.constant 3 : index
    %c4_118 = arith.constant 4 : index
    %210 = memref.load %arg2[%c3_117, %c4_118] : memref<8x10xf32, #tpu.memory_space<smem>>
    %211 = vector.broadcast %210 : f32 to vector<8x324xf32>
    %212 = arith.mulf %43, %211 : vector<8x324xf32>
    %213 = arith.addf %209, %212 : vector<8x324xf32>
    %c3_119 = arith.constant 3 : index
    %c5_120 = arith.constant 5 : index
    %214 = memref.load %arg2[%c3_119, %c5_120] : memref<8x10xf32, #tpu.memory_space<smem>>
    %215 = vector.broadcast %214 : f32 to vector<8x324xf32>
    %216 = arith.mulf %44, %215 : vector<8x324xf32>
    %217 = arith.addf %213, %216 : vector<8x324xf32>
    %c3_121 = arith.constant 3 : index
    %c6_122 = arith.constant 6 : index
    %218 = memref.load %arg2[%c3_121, %c6_122] : memref<8x10xf32, #tpu.memory_space<smem>>
    %219 = vector.broadcast %218 : f32 to vector<8x324xf32>
    %220 = arith.mulf %45, %219 : vector<8x324xf32>
    %221 = arith.addf %217, %220 : vector<8x324xf32>
    %c3_123 = arith.constant 3 : index
    %c7_124 = arith.constant 7 : index
    %222 = memref.load %arg2[%c3_123, %c7_124] : memref<8x10xf32, #tpu.memory_space<smem>>
    %223 = vector.broadcast %222 : f32 to vector<8x324xf32>
    %224 = arith.mulf %46, %223 : vector<8x324xf32>
    %225 = arith.addf %221, %224 : vector<8x324xf32>
    %c3_125 = arith.constant 3 : index
    %c8_126 = arith.constant 8 : index
    %226 = memref.load %arg2[%c3_125, %c8_126] : memref<8x10xf32, #tpu.memory_space<smem>>
    %227 = vector.broadcast %226 : f32 to vector<8x324xf32>
    %228 = arith.mulf %47, %227 : vector<8x324xf32>
    %229 = arith.addf %225, %228 : vector<8x324xf32>
    %c3_127 = arith.constant 3 : index
    %c9_128 = arith.constant 9 : index
    %230 = memref.load %arg2[%c3_127, %c9_128] : memref<8x10xf32, #tpu.memory_space<smem>>
    %231 = vector.broadcast %230 : f32 to vector<8x324xf32>
    %232 = arith.addf %229, %231 : vector<8x324xf32>
    %cst_129 = arith.constant 0.000000e+00 : f32
    %233 = vector.broadcast %cst_129 : f32 to vector<8x324xf32>
    %234 = arith.maximumf %232, %233 : vector<8x324xf32>
    %235 = vector.broadcast %3 : vector<1x324xf32> to vector<8x324xf32>
    %236 = arith.mulf %234, %235 : vector<8x324xf32>
    %cst_130 = arith.constant dense<0.000000e+00> : vector<8xf32>
    %237 = vector.multi_reduction <add>, %236, %cst_130 [1] : vector<8x324xf32> to vector<8xf32>
    %238 = vector.shape_cast %237 : vector<8xf32> to vector<8x1xf32>
    %239 = vector.extract_strided_slice %2 {offsets = [3, 0], sizes = [1, 128], strides = [1, 1]} : vector<9x128xf32> to vector<1x128xf32>
    %240 = vector.broadcast %238 : vector<8x1xf32> to vector<8x128xf32>
    %241 = vector.broadcast %239 : vector<1x128xf32> to vector<8x128xf32>
    %242 = arith.mulf %240, %241 : vector<8x128xf32>
    %243 = arith.addf %194, %242 : vector<8x128xf32>
    %c4_131 = arith.constant 4 : index
    %c0_132 = arith.constant 0 : index
    %244 = memref.load %arg2[%c4_131, %c0_132] : memref<8x10xf32, #tpu.memory_space<smem>>
    %245 = vector.broadcast %244 : f32 to vector<8x324xf32>
    %246 = arith.mulf %39, %245 : vector<8x324xf32>
    %c4_133 = arith.constant 4 : index
    %c1_134 = arith.constant 1 : index
    %247 = memref.load %arg2[%c4_133, %c1_134] : memref<8x10xf32, #tpu.memory_space<smem>>
    %248 = vector.broadcast %247 : f32 to vector<8x324xf32>
    %249 = arith.mulf %40, %248 : vector<8x324xf32>
    %250 = arith.addf %246, %249 : vector<8x324xf32>
    %c4_135 = arith.constant 4 : index
    %c2_136 = arith.constant 2 : index
    %251 = memref.load %arg2[%c4_135, %c2_136] : memref<8x10xf32, #tpu.memory_space<smem>>
    %252 = vector.broadcast %251 : f32 to vector<8x324xf32>
    %253 = arith.mulf %41, %252 : vector<8x324xf32>
    %254 = arith.addf %250, %253 : vector<8x324xf32>
    %c4_137 = arith.constant 4 : index
    %c3_138 = arith.constant 3 : index
    %255 = memref.load %arg2[%c4_137, %c3_138] : memref<8x10xf32, #tpu.memory_space<smem>>
    %256 = vector.broadcast %255 : f32 to vector<8x324xf32>
    %257 = arith.mulf %42, %256 : vector<8x324xf32>
    %258 = arith.addf %254, %257 : vector<8x324xf32>
    %c4_139 = arith.constant 4 : index
    %c4_140 = arith.constant 4 : index
    %259 = memref.load %arg2[%c4_139, %c4_140] : memref<8x10xf32, #tpu.memory_space<smem>>
    %260 = vector.broadcast %259 : f32 to vector<8x324xf32>
    %261 = arith.mulf %43, %260 : vector<8x324xf32>
    %262 = arith.addf %258, %261 : vector<8x324xf32>
    %c4_141 = arith.constant 4 : index
    %c5_142 = arith.constant 5 : index
    %263 = memref.load %arg2[%c4_141, %c5_142] : memref<8x10xf32, #tpu.memory_space<smem>>
    %264 = vector.broadcast %263 : f32 to vector<8x324xf32>
    %265 = arith.mulf %44, %264 : vector<8x324xf32>
    %266 = arith.addf %262, %265 : vector<8x324xf32>
    %c4_143 = arith.constant 4 : index
    %c6_144 = arith.constant 6 : index
    %267 = memref.load %arg2[%c4_143, %c6_144] : memref<8x10xf32, #tpu.memory_space<smem>>
    %268 = vector.broadcast %267 : f32 to vector<8x324xf32>
    %269 = arith.mulf %45, %268 : vector<8x324xf32>
    %270 = arith.addf %266, %269 : vector<8x324xf32>
    %c4_145 = arith.constant 4 : index
    %c7_146 = arith.constant 7 : index
    %271 = memref.load %arg2[%c4_145, %c7_146] : memref<8x10xf32, #tpu.memory_space<smem>>
    %272 = vector.broadcast %271 : f32 to vector<8x324xf32>
    %273 = arith.mulf %46, %272 : vector<8x324xf32>
    %274 = arith.addf %270, %273 : vector<8x324xf32>
    %c4_147 = arith.constant 4 : index
    %c8_148 = arith.constant 8 : index
    %275 = memref.load %arg2[%c4_147, %c8_148] : memref<8x10xf32, #tpu.memory_space<smem>>
    %276 = vector.broadcast %275 : f32 to vector<8x324xf32>
    %277 = arith.mulf %47, %276 : vector<8x324xf32>
    %278 = arith.addf %274, %277 : vector<8x324xf32>
    %c4_149 = arith.constant 4 : index
    %c9_150 = arith.constant 9 : index
    %279 = memref.load %arg2[%c4_149, %c9_150] : memref<8x10xf32, #tpu.memory_space<smem>>
    %280 = vector.broadcast %279 : f32 to vector<8x324xf32>
    %281 = arith.addf %278, %280 : vector<8x324xf32>
    %cst_151 = arith.constant 0.000000e+00 : f32
    %282 = vector.broadcast %cst_151 : f32 to vector<8x324xf32>
    %283 = arith.maximumf %281, %282 : vector<8x324xf32>
    %284 = vector.broadcast %3 : vector<1x324xf32> to vector<8x324xf32>
    %285 = arith.mulf %283, %284 : vector<8x324xf32>
    %cst_152 = arith.constant dense<0.000000e+00> : vector<8xf32>
    %286 = vector.multi_reduction <add>, %285, %cst_152 [1] : vector<8x324xf32> to vector<8xf32>
    %287 = vector.shape_cast %286 : vector<8xf32> to vector<8x1xf32>
    %288 = vector.extract_strided_slice %2 {offsets = [4, 0], sizes = [1, 128], strides = [1, 1]} : vector<9x128xf32> to vector<1x128xf32>
    %289 = vector.broadcast %287 : vector<8x1xf32> to vector<8x128xf32>
    %290 = vector.broadcast %288 : vector<1x128xf32> to vector<8x128xf32>
    %291 = arith.mulf %289, %290 : vector<8x128xf32>
    %292 = arith.addf %243, %291 : vector<8x128xf32>
    %c5_153 = arith.constant 5 : index
    %c0_154 = arith.constant 0 : index
    %293 = memref.load %arg2[%c5_153, %c0_154] : memref<8x10xf32, #tpu.memory_space<smem>>
    %294 = vector.broadcast %293 : f32 to vector<8x324xf32>
    %295 = arith.mulf %39, %294 : vector<8x324xf32>
    %c5_155 = arith.constant 5 : index
    %c1_156 = arith.constant 1 : index
    %296 = memref.load %arg2[%c5_155, %c1_156] : memref<8x10xf32, #tpu.memory_space<smem>>
    %297 = vector.broadcast %296 : f32 to vector<8x324xf32>
    %298 = arith.mulf %40, %297 : vector<8x324xf32>
    %299 = arith.addf %295, %298 : vector<8x324xf32>
    %c5_157 = arith.constant 5 : index
    %c2_158 = arith.constant 2 : index
    %300 = memref.load %arg2[%c5_157, %c2_158] : memref<8x10xf32, #tpu.memory_space<smem>>
    %301 = vector.broadcast %300 : f32 to vector<8x324xf32>
    %302 = arith.mulf %41, %301 : vector<8x324xf32>
    %303 = arith.addf %299, %302 : vector<8x324xf32>
    %c5_159 = arith.constant 5 : index
    %c3_160 = arith.constant 3 : index
    %304 = memref.load %arg2[%c5_159, %c3_160] : memref<8x10xf32, #tpu.memory_space<smem>>
    %305 = vector.broadcast %304 : f32 to vector<8x324xf32>
    %306 = arith.mulf %42, %305 : vector<8x324xf32>
    %307 = arith.addf %303, %306 : vector<8x324xf32>
    %c5_161 = arith.constant 5 : index
    %c4_162 = arith.constant 4 : index
    %308 = memref.load %arg2[%c5_161, %c4_162] : memref<8x10xf32, #tpu.memory_space<smem>>
    %309 = vector.broadcast %308 : f32 to vector<8x324xf32>
    %310 = arith.mulf %43, %309 : vector<8x324xf32>
    %311 = arith.addf %307, %310 : vector<8x324xf32>
    %c5_163 = arith.constant 5 : index
    %c5_164 = arith.constant 5 : index
    %312 = memref.load %arg2[%c5_163, %c5_164] : memref<8x10xf32, #tpu.memory_space<smem>>
    %313 = vector.broadcast %312 : f32 to vector<8x324xf32>
    %314 = arith.mulf %44, %313 : vector<8x324xf32>
    %315 = arith.addf %311, %314 : vector<8x324xf32>
    %c5_165 = arith.constant 5 : index
    %c6_166 = arith.constant 6 : index
    %316 = memref.load %arg2[%c5_165, %c6_166] : memref<8x10xf32, #tpu.memory_space<smem>>
    %317 = vector.broadcast %316 : f32 to vector<8x324xf32>
    %318 = arith.mulf %45, %317 : vector<8x324xf32>
    %319 = arith.addf %315, %318 : vector<8x324xf32>
    %c5_167 = arith.constant 5 : index
    %c7_168 = arith.constant 7 : index
    %320 = memref.load %arg2[%c5_167, %c7_168] : memref<8x10xf32, #tpu.memory_space<smem>>
    %321 = vector.broadcast %320 : f32 to vector<8x324xf32>
    %322 = arith.mulf %46, %321 : vector<8x324xf32>
    %323 = arith.addf %319, %322 : vector<8x324xf32>
    %c5_169 = arith.constant 5 : index
    %c8_170 = arith.constant 8 : index
    %324 = memref.load %arg2[%c5_169, %c8_170] : memref<8x10xf32, #tpu.memory_space<smem>>
    %325 = vector.broadcast %324 : f32 to vector<8x324xf32>
    %326 = arith.mulf %47, %325 : vector<8x324xf32>
    %327 = arith.addf %323, %326 : vector<8x324xf32>
    %c5_171 = arith.constant 5 : index
    %c9_172 = arith.constant 9 : index
    %328 = memref.load %arg2[%c5_171, %c9_172] : memref<8x10xf32, #tpu.memory_space<smem>>
    %329 = vector.broadcast %328 : f32 to vector<8x324xf32>
    %330 = arith.addf %327, %329 : vector<8x324xf32>
    %cst_173 = arith.constant 0.000000e+00 : f32
    %331 = vector.broadcast %cst_173 : f32 to vector<8x324xf32>
    %332 = arith.maximumf %330, %331 : vector<8x324xf32>
    %333 = vector.broadcast %3 : vector<1x324xf32> to vector<8x324xf32>
    %334 = arith.mulf %332, %333 : vector<8x324xf32>
    %cst_174 = arith.constant dense<0.000000e+00> : vector<8xf32>
    %335 = vector.multi_reduction <add>, %334, %cst_174 [1] : vector<8x324xf32> to vector<8xf32>
    %336 = vector.shape_cast %335 : vector<8xf32> to vector<8x1xf32>
    %337 = vector.extract_strided_slice %2 {offsets = [5, 0], sizes = [1, 128], strides = [1, 1]} : vector<9x128xf32> to vector<1x128xf32>
    %338 = vector.broadcast %336 : vector<8x1xf32> to vector<8x128xf32>
    %339 = vector.broadcast %337 : vector<1x128xf32> to vector<8x128xf32>
    %340 = arith.mulf %338, %339 : vector<8x128xf32>
    %341 = arith.addf %292, %340 : vector<8x128xf32>
    %c6_175 = arith.constant 6 : index
    %c0_176 = arith.constant 0 : index
    %342 = memref.load %arg2[%c6_175, %c0_176] : memref<8x10xf32, #tpu.memory_space<smem>>
    %343 = vector.broadcast %342 : f32 to vector<8x324xf32>
    %344 = arith.mulf %39, %343 : vector<8x324xf32>
    %c6_177 = arith.constant 6 : index
    %c1_178 = arith.constant 1 : index
    %345 = memref.load %arg2[%c6_177, %c1_178] : memref<8x10xf32, #tpu.memory_space<smem>>
    %346 = vector.broadcast %345 : f32 to vector<8x324xf32>
    %347 = arith.mulf %40, %346 : vector<8x324xf32>
    %348 = arith.addf %344, %347 : vector<8x324xf32>
    %c6_179 = arith.constant 6 : index
    %c2_180 = arith.constant 2 : index
    %349 = memref.load %arg2[%c6_179, %c2_180] : memref<8x10xf32, #tpu.memory_space<smem>>
    %350 = vector.broadcast %349 : f32 to vector<8x324xf32>
    %351 = arith.mulf %41, %350 : vector<8x324xf32>
    %352 = arith.addf %348, %351 : vector<8x324xf32>
    %c6_181 = arith.constant 6 : index
    %c3_182 = arith.constant 3 : index
    %353 = memref.load %arg2[%c6_181, %c3_182] : memref<8x10xf32, #tpu.memory_space<smem>>
    %354 = vector.broadcast %353 : f32 to vector<8x324xf32>
    %355 = arith.mulf %42, %354 : vector<8x324xf32>
    %356 = arith.addf %352, %355 : vector<8x324xf32>
    %c6_183 = arith.constant 6 : index
    %c4_184 = arith.constant 4 : index
    %357 = memref.load %arg2[%c6_183, %c4_184] : memref<8x10xf32, #tpu.memory_space<smem>>
    %358 = vector.broadcast %357 : f32 to vector<8x324xf32>
    %359 = arith.mulf %43, %358 : vector<8x324xf32>
    %360 = arith.addf %356, %359 : vector<8x324xf32>
    %c6_185 = arith.constant 6 : index
    %c5_186 = arith.constant 5 : index
    %361 = memref.load %arg2[%c6_185, %c5_186] : memref<8x10xf32, #tpu.memory_space<smem>>
    %362 = vector.broadcast %361 : f32 to vector<8x324xf32>
    %363 = arith.mulf %44, %362 : vector<8x324xf32>
    %364 = arith.addf %360, %363 : vector<8x324xf32>
    %c6_187 = arith.constant 6 : index
    %c6_188 = arith.constant 6 : index
    %365 = memref.load %arg2[%c6_187, %c6_188] : memref<8x10xf32, #tpu.memory_space<smem>>
    %366 = vector.broadcast %365 : f32 to vector<8x324xf32>
    %367 = arith.mulf %45, %366 : vector<8x324xf32>
    %368 = arith.addf %364, %367 : vector<8x324xf32>
    %c6_189 = arith.constant 6 : index
    %c7_190 = arith.constant 7 : index
    %369 = memref.load %arg2[%c6_189, %c7_190] : memref<8x10xf32, #tpu.memory_space<smem>>
    %370 = vector.broadcast %369 : f32 to vector<8x324xf32>
    %371 = arith.mulf %46, %370 : vector<8x324xf32>
    %372 = arith.addf %368, %371 : vector<8x324xf32>
    %c6_191 = arith.constant 6 : index
    %c8_192 = arith.constant 8 : index
    %373 = memref.load %arg2[%c6_191, %c8_192] : memref<8x10xf32, #tpu.memory_space<smem>>
    %374 = vector.broadcast %373 : f32 to vector<8x324xf32>
    %375 = arith.mulf %47, %374 : vector<8x324xf32>
    %376 = arith.addf %372, %375 : vector<8x324xf32>
    %c6_193 = arith.constant 6 : index
    %c9_194 = arith.constant 9 : index
    %377 = memref.load %arg2[%c6_193, %c9_194] : memref<8x10xf32, #tpu.memory_space<smem>>
    %378 = vector.broadcast %377 : f32 to vector<8x324xf32>
    %379 = arith.addf %376, %378 : vector<8x324xf32>
    %cst_195 = arith.constant 0.000000e+00 : f32
    %380 = vector.broadcast %cst_195 : f32 to vector<8x324xf32>
    %381 = arith.maximumf %379, %380 : vector<8x324xf32>
    %382 = vector.broadcast %3 : vector<1x324xf32> to vector<8x324xf32>
    %383 = arith.mulf %381, %382 : vector<8x324xf32>
    %cst_196 = arith.constant dense<0.000000e+00> : vector<8xf32>
    %384 = vector.multi_reduction <add>, %383, %cst_196 [1] : vector<8x324xf32> to vector<8xf32>
    %385 = vector.shape_cast %384 : vector<8xf32> to vector<8x1xf32>
    %386 = vector.extract_strided_slice %2 {offsets = [6, 0], sizes = [1, 128], strides = [1, 1]} : vector<9x128xf32> to vector<1x128xf32>
    %387 = vector.broadcast %385 : vector<8x1xf32> to vector<8x128xf32>
    %388 = vector.broadcast %386 : vector<1x128xf32> to vector<8x128xf32>
    %389 = arith.mulf %387, %388 : vector<8x128xf32>
    %390 = arith.addf %341, %389 : vector<8x128xf32>
    %c7_197 = arith.constant 7 : index
    %c0_198 = arith.constant 0 : index
    %391 = memref.load %arg2[%c7_197, %c0_198] : memref<8x10xf32, #tpu.memory_space<smem>>
    %392 = vector.broadcast %391 : f32 to vector<8x324xf32>
    %393 = arith.mulf %39, %392 : vector<8x324xf32>
    %c7_199 = arith.constant 7 : index
    %c1_200 = arith.constant 1 : index
    %394 = memref.load %arg2[%c7_199, %c1_200] : memref<8x10xf32, #tpu.memory_space<smem>>
    %395 = vector.broadcast %394 : f32 to vector<8x324xf32>
    %396 = arith.mulf %40, %395 : vector<8x324xf32>
    %397 = arith.addf %393, %396 : vector<8x324xf32>
    %c7_201 = arith.constant 7 : index
    %c2_202 = arith.constant 2 : index
    %398 = memref.load %arg2[%c7_201, %c2_202] : memref<8x10xf32, #tpu.memory_space<smem>>
    %399 = vector.broadcast %398 : f32 to vector<8x324xf32>
    %400 = arith.mulf %41, %399 : vector<8x324xf32>
    %401 = arith.addf %397, %400 : vector<8x324xf32>
    %c7_203 = arith.constant 7 : index
    %c3_204 = arith.constant 3 : index
    %402 = memref.load %arg2[%c7_203, %c3_204] : memref<8x10xf32, #tpu.memory_space<smem>>
    %403 = vector.broadcast %402 : f32 to vector<8x324xf32>
    %404 = arith.mulf %42, %403 : vector<8x324xf32>
    %405 = arith.addf %401, %404 : vector<8x324xf32>
    %c7_205 = arith.constant 7 : index
    %c4_206 = arith.constant 4 : index
    %406 = memref.load %arg2[%c7_205, %c4_206] : memref<8x10xf32, #tpu.memory_space<smem>>
    %407 = vector.broadcast %406 : f32 to vector<8x324xf32>
    %408 = arith.mulf %43, %407 : vector<8x324xf32>
    %409 = arith.addf %405, %408 : vector<8x324xf32>
    %c7_207 = arith.constant 7 : index
    %c5_208 = arith.constant 5 : index
    %410 = memref.load %arg2[%c7_207, %c5_208] : memref<8x10xf32, #tpu.memory_space<smem>>
    %411 = vector.broadcast %410 : f32 to vector<8x324xf32>
    %412 = arith.mulf %44, %411 : vector<8x324xf32>
    %413 = arith.addf %409, %412 : vector<8x324xf32>
    %c7_209 = arith.constant 7 : index
    %c6_210 = arith.constant 6 : index
    %414 = memref.load %arg2[%c7_209, %c6_210] : memref<8x10xf32, #tpu.memory_space<smem>>
    %415 = vector.broadcast %414 : f32 to vector<8x324xf32>
    %416 = arith.mulf %45, %415 : vector<8x324xf32>
    %417 = arith.addf %413, %416 : vector<8x324xf32>
    %c7_211 = arith.constant 7 : index
    %c7_212 = arith.constant 7 : index
    %418 = memref.load %arg2[%c7_211, %c7_212] : memref<8x10xf32, #tpu.memory_space<smem>>
    %419 = vector.broadcast %418 : f32 to vector<8x324xf32>
    %420 = arith.mulf %46, %419 : vector<8x324xf32>
    %421 = arith.addf %417, %420 : vector<8x324xf32>
    %c7_213 = arith.constant 7 : index
    %c8_214 = arith.constant 8 : index
    %422 = memref.load %arg2[%c7_213, %c8_214] : memref<8x10xf32, #tpu.memory_space<smem>>
    %423 = vector.broadcast %422 : f32 to vector<8x324xf32>
    %424 = arith.mulf %47, %423 : vector<8x324xf32>
    %425 = arith.addf %421, %424 : vector<8x324xf32>
    %c7_215 = arith.constant 7 : index
    %c9_216 = arith.constant 9 : index
    %426 = memref.load %arg2[%c7_215, %c9_216] : memref<8x10xf32, #tpu.memory_space<smem>>
    %427 = vector.broadcast %426 : f32 to vector<8x324xf32>
    %428 = arith.addf %425, %427 : vector<8x324xf32>
    %cst_217 = arith.constant 0.000000e+00 : f32
    %429 = vector.broadcast %cst_217 : f32 to vector<8x324xf32>
    %430 = arith.maximumf %428, %429 : vector<8x324xf32>
    %431 = vector.broadcast %3 : vector<1x324xf32> to vector<8x324xf32>
    %432 = arith.mulf %430, %431 : vector<8x324xf32>
    %cst_218 = arith.constant dense<0.000000e+00> : vector<8xf32>
    %433 = vector.multi_reduction <add>, %432, %cst_218 [1] : vector<8x324xf32> to vector<8xf32>
    %434 = vector.shape_cast %433 : vector<8xf32> to vector<8x1xf32>
    %435 = vector.extract_strided_slice %2 {offsets = [7, 0], sizes = [1, 128], strides = [1, 1]} : vector<9x128xf32> to vector<1x128xf32>
    %436 = vector.broadcast %434 : vector<8x1xf32> to vector<8x128xf32>
    %437 = vector.broadcast %435 : vector<1x128xf32> to vector<8x128xf32>
    %438 = arith.mulf %436, %437 : vector<8x128xf32>
    %439 = arith.addf %390, %438 : vector<8x128xf32>
    %c0_219 = arith.constant 0 : index
    %c0_220 = arith.constant 0 : index
    %440 = vector.load %arg5[%c0_219, %c0_220] : memref<8x128xf32, #tpu.memory_space<vmem>>, vector<8x128xf32>
    tpu.vector_store %arg5[%c0_219, %c0_220], %439 {strides = array<i32>} : memref<8x128xf32, #tpu.memory_space<vmem>>, vector<8x128xf32>,
    return
  }
  func.func @transform_0(%arg0: i32) -> (i32, i32) {
    %c0_i32 = arith.constant 0 : i32
    %c0_i32_0 = arith.constant 0 : i32
    return %arg0, %c0_i32 : i32, i32
  }
  func.func @transform_1(%arg0: i32) -> (i32, i32) {
    %c0_i32 = arith.constant 0 : i32
    %c0_i32_0 = arith.constant 0 : i32
    %c0_i32_1 = arith.constant 0 : i32
    return %c0_i32, %c0_i32_0 : i32, i32
  }
  func.func @transform_2(%arg0: i32) -> (i32, i32) {
    %c0_i32 = arith.constant 0 : i32
    %c0_i32_0 = arith.constant 0 : i32
    %c0_i32_1 = arith.constant 0 : i32
    return %c0_i32, %c0_i32_0 : i32, i32
  }
  func.func @transform_3(%arg0: i32) -> (i32, i32) {
    %c0_i32 = arith.constant 0 : i32
    %c0_i32_0 = arith.constant 0 : i32
    %c0_i32_1 = arith.constant 0 : i32
    return %c0_i32, %c0_i32_0 : i32, i32
  }
  func.func @transform_4(%arg0: i32) -> (i32, i32) {
    %c0_i32 = arith.constant 0 : i32
    %c0_i32_0 = arith.constant 0 : i32
    return %arg0, %c0_i32 : i32, i32
  }
}

</mosaic_0001>

<llo_original>
// kernel: tpu_custom_call.1
$region0: #{tpu_custom_call.1}
  #allocation0 [shape = 'u32[]', space=smem, size = 0x4, offset = 0x4, fixed_abs, tag = 'smem constant byte address 0x4 - core index']
  #allocation1 [shape = 'u32[144,128]{1,0:T(1,128)}', space=vmem, size = 0x12000, scoped, tag = 'internal scratch']
  #allocation2 [shape = 'f32[8,384]{1,0:T(8,128)}', space=vmem, size = 0x3000, scoped, tag = 'scratch operand']
  %s0 = inlined_call_operand.hbm [shape: f32[8,256], index: 0, kind: input, shape index: {}]
  %s1 = inlined_call_operand.hbm [shape: f32[8,10], index: 1, kind: input, shape index: {}]
  %s2 = inlined_call_operand.hbm [shape: f32[9,128], index: 2, kind: input, shape index: {}]
  %s3 = inlined_call_operand.vmem [shape: f32[1,384], index: 3, kind: input, shape index: {}]
  %s4 = inlined_call_operand.hbm [shape: f32[8,128], index: 4, kind: output, shape index: {}]
  %s5 = sld [smem:[#allocation0]]
  $region38: #{tpu_custom_call.1} parent=0
    _
  %s7 = ssub.s32 1, %s5
  %s8 = scalar_select 0, %s7, %s5
  $region1: #{tpu_custom_call.1} parent=0
    #allocation3 [shape = 'u8[8192]{0}', space=vmem, size = 0x2000, scoped, tag = 'input window, operand 0, single buffered']
    #allocation4 [shape = 's32[1]{0}', space=sflag, size = 0x4, scoped, tag = 'scoped memory for tpu_custom_call.1']
    #allocation5 [shape = 's32[1]{0}', space=sflag, size = 0x4, scoped, tag = 'scoped memory for tpu_custom_call.1']
    #allocation6 [shape = 's32[1]{0}', space=sflag, size = 0x4, scoped, tag = 'scoped memory for tpu_custom_call.1']
    #allocation7 [shape = 'u8[4096]{0}', space=smem, size = 0x1000, scoped, tag = 'input window, operand 1, single buffered']
    #allocation8 [shape = 'u8[8192]{0}', space=vmem, size = 0x2000, scoped, tag = 'input window, operand 2, single buffered']
    #allocation9 [shape = 's32[1]{0}', space=sflag, size = 0x4, scoped, tag = 'scoped memory for tpu_custom_call.1']
    #allocation10 [shape = 'u8[4096]{0}', space=vmem, size = 0x1000, scoped, tag = 'output window, operand 0, single buffered']
    %9 = vsyncpa [#allocation4], 0
    %10 = vsyncpa [#allocation6], 0
    %11 = vsyncpa [#allocation9], 0
    %12 = vsyncpa [#allocation5], 0
    // Predicated region
    $region2: #{tpu_custom_call.1} parent=1 // pred_check
      _
    $region3: #{tpu_custom_call.1} parent=1 // pred_check_branch
      %14 = sbr.rel (0) target = $region5
    $region4: #{tpu_custom_call.1} parent=1 // pred_region
      %s16 = ssub.s32 256, 256
      %17 = vsyncadd [#allocation4], %s16
      %s19 = sshll.u32 [#allocation3], 4
      %s20 = int_to_ptr.vmem [resolvable:$true] %s19
      %22 = dma.hbm_to_vmem [thread:$0]  %s0, 256, %s20, [#allocation4]
    $region5: #{tpu_custom_call.1} parent=1 // pred_fallthru
      _
    // Predicated region
    $region6: #{tpu_custom_call.1} parent=1 // pred_check
      _
    $region7: #{tpu_custom_call.1} parent=1 // pred_check_branch
      %24 = sbr.rel (0) target = $region9
    $region8: #{tpu_custom_call.1} parent=1 // pred_region
      %s26 = ssub.s32 128, 128
      %27 = vsyncadd [#allocation6], %s26
      %30 = dma.hbm_to_smem %s1, 128, [#allocation7], [#allocation6]
    $region9: #{tpu_custom_call.1} parent=1 // pred_fallthru
      _
    // Predicated region
    $region10: #{tpu_custom_call.1} parent=1 // pred_check
      _
    $region11: #{tpu_custom_call.1} parent=1 // pred_check_branch
      %32 = sbr.rel (0) target = $region13
    $region12: #{tpu_custom_call.1} parent=1 // pred_region
      %s34 = ssub.s32 256, 256
      %35 = vsyncadd [#allocation9], %s34
      %s36 = sshll.u32 [#allocation8], 4
      %s37 = int_to_ptr.vmem [resolvable:$true] %s36
      %42 = dma.hbm_to_vmem [thread:$0]  %s2, 256, %s37, [#allocation9], 128, 128, 8
    $region13: #{tpu_custom_call.1} parent=1 // pred_fallthru
      _
    // Predicated region
    $region14: #{tpu_custom_call.1} parent=1 // pred_check
      _
    $region15: #{tpu_custom_call.1} parent=1 // pred_check_branch
      %44 = sbr.rel (0) target = $region17
    $region16: #{tpu_custom_call.1} parent=1 // pred_region
      _
    $region17: #{tpu_custom_call.1} parent=1 // pred_fallthru
      _
    // Predicated region
    $region18: #{tpu_custom_call.1} parent=1 // pred_check
      _
    $region19: #{tpu_custom_call.1} parent=1 // pred_check_branch
      %46 = sbr.rel (0) target = $region21
    $region20: #{tpu_custom_call.1} parent=1 // pred_region
      %47 = dma.done [#allocation4], 256
    $region21: #{tpu_custom_call.1} parent=1 // pred_fallthru
      _
    // Predicated region
    $region22: #{tpu_custom_call.1} parent=1 // pred_check
      _
    $region23: #{tpu_custom_call.1} parent=1 // pred_check_branch
      %49 = sbr.rel (0) target = $region25
    $region24: #{tpu_custom_call.1} parent=1 // pred_region
      %50 = dma.done [#allocation6], 128
    $region25: #{tpu_custom_call.1} parent=1 // pred_fallthru
      _
    // Predicated region
    $region26: #{tpu_custom_call.1} parent=1 // pred_check
      _
    $region27: #{tpu_custom_call.1} parent=1 // pred_check_branch
      %52 = sbr.rel (0) target = $region29
    $region28: #{tpu_custom_call.1} parent=1 // pred_region
      %53 = dma.done [#allocation9], 256
    $region29: #{tpu_custom_call.1} parent=1 // pred_fallthru
      _
    %54 = sfence
    %55 = vst [vmem:[#allocation2] sm:$0xff] 0.0
    %56 = vst [vmem:[#allocation2 + $0x8] sm:$0xff] 0.0
    %57 = vst [vmem:[#allocation2 + $0x10] sm:$0xff] 0.0
    %v58 = vld [vmem:[#allocation8] sm:$0xff]
    %v59 = vld [vmem:[#allocation8 + $0x8] sm:$0x1]
    %v60 = vld [vmem:[%s3] sm:$0x7]
    %v61 = vlaneseq
    %v62 = vshrl.u32 %v61, 7
    %v63 = vsub.s32 0, %v62
    %v64 = vrot.slane %v59, %v63
    %v65 = vld [vmem:[#allocation3] sm:$0xff]
    %67 = vrot.lane.b32.xlu0 %v65, 19
    %v68 = vpop.permute.xlu0 %67
    %vm70 = vcmask 285848
    %71 = vst.msk [vmem:[#allocation2] sm:$0xff] %vm70, %v68
    %v72 = vld [vmem:[#allocation3] sm:$0xff]
    %74 = vrot.lane.b32.xlu0 %v72, 21
    %v75 = vpop.permute.xlu0 %74
    %vm77 = vcmask 433448
    %78 = vst.msk [vmem:[#allocation2] sm:$0xff] %vm77, %v75
    %v79 = vld [vmem:[#allocation3] sm:$0xff]
    %81 = vrot.lane.b32.xlu0 %v79, 23
    %v82 = vpop.permute.xlu0 %81
    %vm84 = vcmask 581048
    %85 = vst.msk [vmem:[#allocation2] sm:$0xff] %vm84, %v82
    %v86 = vld [vmem:[#allocation3] sm:$0xff]
    %88 = vrot.lane.b32.xlu0 %v86, 25
    %v89 = vpop.permute.xlu0 %88
    %vm91 = vcmask 728648
    %92 = vst.msk [vmem:[#allocation2] sm:$0xff] %vm91, %v89
    %v93 = vld [vmem:[#allocation3] sm:$0xff]
    %95 = vrot.lane.b32.xlu0 %v93, 27
    %v96 = vpop.permute.xlu0 %95
    %vm98 = vcmask 876248
    %99 = vst.msk [vmem:[#allocation2] sm:$0xff] %vm98, %v96
    %v100 = vld [vmem:[#allocation3] sm:$0xff]
    %102 = vrot.lane.b32.xlu0 %v100, 29
    %v103 = vpop.permute.xlu0 %102
    %vm105 = vcmask 1023848
    %106 = vst.msk [vmem:[#allocation2] sm:$0xff] %vm105, %v103
    %v107 = vld [vmem:[#allocation3] sm:$0xff]
    %109 = vrot.lane.b32.xlu0 %v107, 31
    %v110 = vpop.permute.xlu0 %109
    %vm112 = vcmask 1048568
    %113 = vst.msk [vmem:[#allocation2] sm:$0xff] %vm112, %v110
    %vm114 = vcmask 121856
    %115 = vst.msk [vmem:[#allocation2 + $0x8] sm:$0xff] %vm114, %v110
    %v116 = vld [vmem:[#allocation3] sm:$0xff]
    %118 = vrot.lane.b32.xlu0 %v116, 33
    %v119 = vpop.permute.xlu0 %118
    %vm121 = vcmask 269448
    %122 = vst.msk [vmem:[#allocation2 + $0x8] sm:$0xff] %vm121, %v119
    %v123 = vld [vmem:[#allocation3 + $0x8] sm:$0xff]
    %125 = vrot.lane.b32.xlu0 %v123, 35
    %v126 = vpop.permute.xlu0 %125
    %vm128 = vcmask 417048
    %129 = vst.msk [vmem:[#allocation2 + $0x8] sm:$0xff] %vm128, %v126
    %v130 = vld [vmem:[#allocation3 + $0x8] sm:$0xff]
    %132 = vrot.lane.b32.xlu0 %v130, 37
    %v133 = vpop.permute.xlu0 %132
    %vm135 = vcmask 564648
    %136 = vst.msk [vmem:[#allocation2 + $0x8] sm:$0xff] %vm135, %v133
    %v137 = vld [vmem:[#allocation3 + $0x8] sm:$0xff]
    %139 = vrot.lane.b32.xlu0 %v137, 39
    %v140 = vpop.permute.xlu0 %139
    %vm142 = vcmask 712248
    %143 = vst.msk [vmem:[#allocation2 + $0x8] sm:$0xff] %vm142, %v140
    %v144 = vld [vmem:[#allocation3 + $0x8] sm:$0xff]
    %146 = vrot.lane.b32.xlu0 %v144, 41
    %v147 = vpop.permute.xlu0 %146
    %vm149 = vcmask 859848
    %150 = vst.msk [vmem:[#allocation2 + $0x8] sm:$0xff] %vm149, %v147
    %v151 = vld [vmem:[#allocation3 + $0x8] sm:$0xff]
    %153 = vrot.lane.b32.xlu0 %v151, 43
    %v154 = vpop.permute.xlu0 %153
    %vm156 = vcmask 1007448
    %157 = vst.msk [vmem:[#allocation2 + $0x8] sm:$0xff] %vm156, %v154
    %v158 = vld [vmem:[#allocation3 + $0x8] sm:$0xff]
    %160 = vrot.lane.b32.xlu0 %v158, 45
    %v161 = vpop.permute.xlu0 %160
    %vm163 = vcmask 1048552
    %164 = vst.msk [vmem:[#allocation2 + $0x8] sm:$0xff] %vm163, %v161
    %vm165 = vcmask 105472
    %166 = vst.msk [vmem:[#allocation2 + $0x10] sm:$0xff] %vm165, %v161
    %v167 = vld [vmem:[#allocation3 + $0x8] sm:$0xff]
    %169 = vrot.lane.b32.xlu0 %v167, 47
    %v170 = vpop.permute.xlu0 %169
    %vm172 = vcmask 253048
    %173 = vst.msk [vmem:[#allocation2 + $0x10] sm:$0xff] %vm172, %v170
    %v174 = vld [vmem:[#allocation3 + $0x8] sm:$0xff]
    %176 = vrot.lane.b32.xlu0 %v174, 49
    %v177 = vpop.permute.xlu0 %176
    %vm179 = vcmask 400648
    %180 = vst.msk [vmem:[#allocation2 + $0x10] sm:$0xff] %vm179, %v177
    %v181 = vld [vmem:[#allocation2] sm:$0xff]
    %v182 = vld [vmem:[#allocation2 + $0x8] sm:$0xff]
    %v183 = vld [vmem:[#allocation2 + $0x10] sm:$0xff]
    %s184 = sld [smem:[#allocation7]]
    %v185 = vstv %s184
    %v186 = vmul.f32 %v181, %v185
    %v187 = vmul.f32 %v182, %v185
    %v188 = vmul.f32 %v183, %v185
    %s189 = sld [smem:[#allocation7 + $0x1]]
    %v190 = vstv %s189
    %v191 = vmul.f32 %v181, %v190
    %v192 = vmul.f32 %v182, %v190
    %v193 = vmul.f32 %v183, %v190
    %197 = vrot.lane.b32.xlu0 %v191, 127
    %v198 = vpop.permute.xlu0 %197
    %199 = vrot.lane.b32.xlu0 %v192, 127
    %v200 = vpop.permute.xlu0 %199
    %201 = vrot.lane.b32.xlu0 %v193, 127
    %v202 = vpop.permute.xlu0 %201
    %vm203 = vcmask 1039360
    %v204 = vsel %vm203, %v198, %v200
    %v205 = vsel %vm203, %v200, %v202
    %v209 = vadd.f32 %v186, %v204
    %v210 = vadd.f32 %v187, %v205
    %v211 = vadd.f32 %v188, %v202
    %s212 = sld [smem:[#allocation7 + $0x2]]
    %v213 = vstv %s212
    %v214 = vmul.f32 %v181, %v213
    %v215 = vmul.f32 %v182, %v213
    %v216 = vmul.f32 %v183, %v213
    %220 = vrot.lane.b32.xlu0 %v214, 126
    %v221 = vpop.permute.xlu0 %220
    %222 = vrot.lane.b32.xlu0 %v215, 126
    %v223 = vpop.permute.xlu0 %222
    %224 = vrot.lane.b32.xlu0 %v216, 126
    %v225 = vpop.permute.xlu0 %224
    %vm226 = vcmask 1031168
    %v227 = vsel %vm226, %v221, %v223
    %v228 = vsel %vm226, %v223, %v225
    %v232 = vadd.f32 %v209, %v227
    %v233 = vadd.f32 %v210, %v228
    %v234 = vadd.f32 %v211, %v225
    %s235 = sld [smem:[#allocation7 + $0x3]]
    %v236 = vstv %s235
    %v237 = vmul.f32 %v181, %v236
    %v238 = vmul.f32 %v182, %v236
    %v239 = vmul.f32 %v183, %v236
    %243 = vrot.lane.b32.xlu0 %v237, 110
    %v244 = vpop.permute.xlu0 %243
    %245 = vrot.lane.b32.xlu0 %v238, 110
    %v246 = vpop.permute.xlu0 %245
    %247 = vrot.lane.b32.xlu0 %v239, 110
    %v248 = vpop.permute.xlu0 %247
    %vm249 = vcmask 900096
    %v250 = vsel %vm249, %v244, %v246
    %v251 = vsel %vm249, %v246, %v248
    %v255 = vadd.f32 %v232, %v250
    %v256 = vadd.f32 %v233, %v251
    %v257 = vadd.f32 %v234, %v248
    %s258 = sld [smem:[#allocation7 + $0x4]]
    %v259 = vstv %s258
    %v260 = vmul.f32 %v181, %v259
    %v261 = vmul.f32 %v182, %v259
    %v262 = vmul.f32 %v183, %v259
    %266 = vrot.lane.b32.xlu0 %v260, 109
    %v267 = vpop.permute.xlu0 %266
    %268 = vrot.lane.b32.xlu0 %v261, 109
    %v269 = vpop.permute.xlu0 %268
    %270 = vrot.lane.b32.xlu0 %v262, 109
    %v271 = vpop.permute.xlu0 %270
    %vm272 = vcmask 891904
    %v273 = vsel %vm272, %v267, %v269
    %v274 = vsel %vm272, %v269, %v271
    %v278 = vadd.f32 %v255, %v273
    %v279 = vadd.f32 %v256, %v274
    %v280 = vadd.f32 %v257, %v271
    %s281 = sld [smem:[#allocation7 + $0x5]]
    %v282 = vstv %s281
    %v283 = vmul.f32 %v181, %v282
    %v284 = vmul.f32 %v182, %v282
    %v285 = vmul.f32 %v183, %v282
    %289 = vrot.lane.b32.xlu0 %v283, 108
    %v290 = vpop.permute.xlu0 %289
    %291 = vrot.lane.b32.xlu0 %v284, 108
    %v292 = vpop.permute.xlu0 %291
    %293 = vrot.lane.b32.xlu0 %v285, 108
    %v294 = vpop.permute.xlu0 %293
    %vm295 = vcmask 883712
    %v296 = vsel %vm295, %v290, %v292
    %v297 = vsel %vm295, %v292, %v294
    %v301 = vadd.f32 %v278, %v296
    %v302 = vadd.f32 %v279, %v297
    %v303 = vadd.f32 %v280, %v294
    %s304 = sld [smem:[#allocation7 + $0x6]]
    %v305 = vstv %s304
    %v306 = vmul.f32 %v181, %v305
    %v307 = vmul.f32 %v182, %v305
    %v308 = vmul.f32 %v183, %v305
    %312 = vrot.lane.b32.xlu0 %v306, 92
    %v313 = vpop.permute.xlu0 %312
    %314 = vrot.lane.b32.xlu0 %v307, 92
    %v315 = vpop.permute.xlu0 %314
    %316 = vrot.lane.b32.xlu0 %v308, 92
    %v317 = vpop.permute.xlu0 %316
    %vm318 = vcmask 752640
    %v319 = vsel %vm318, %v313, %v315
    %v320 = vsel %vm318, %v315, %v317
    %v324 = vadd.f32 %v301, %v319
    %v325 = vadd.f32 %v302, %v320
    %v326 = vadd.f32 %v303, %v317
    %s327 = sld [smem:[#allocation7 + $0x7]]
    %v328 = vstv %s327
    %v329 = vmul.f32 %v181, %v328
    %v330 = vmul.f32 %v182, %v328
    %v331 = vmul.f32 %v183, %v328
    %335 = vrot.lane.b32.xlu0 %v329, 91
    %v336 = vpop.permute.xlu0 %335
    %337 = vrot.lane.b32.xlu0 %v330, 91
    %v338 = vpop.permute.xlu0 %337
    %339 = vrot.lane.b32.xlu0 %v331, 91
    %v340 = vpop.permute.xlu0 %339
    %vm341 = vcmask 744448
    %v342 = vsel %vm341, %v336, %v338
    %v343 = vsel %vm341, %v338, %v340
    %v347 = vadd.f32 %v324, %v342
    %v348 = vadd.f32 %v325, %v343
    %v349 = vadd.f32 %v326, %v340
    %s350 = sld [smem:[#allocation7 + $0x8]]
    %v351 = vstv %s350
    %v352 = vmul.f32 %v181, %v351
    %v353 = vmul.f32 %v182, %v351
    %v354 = vmul.f32 %v183, %v351
    %358 = vrot.lane.b32.xlu0 %v352, 90
    %v359 = vpop.permute.xlu0 %358
    %360 = vrot.lane.b32.xlu0 %v353, 90
    %v361 = vpop.permute.xlu0 %360
    %362 = vrot.lane.b32.xlu0 %v354, 90
    %v363 = vpop.permute.xlu0 %362
    %vm364 = vcmask 736256
    %v365 = vsel %vm364, %v359, %v361
    %v366 = vsel %vm364, %v361, %v363
    %v370 = vadd.f32 %v347, %v365
    %v371 = vadd.f32 %v348, %v366
    %v372 = vadd.f32 %v349, %v363
    %s373 = sld [smem:[#allocation7 + $0x9]]
    %v374 = vstv %s373
    %v375 = vadd.f32 %v370, %v374
    %v376 = vadd.f32 %v371, %v374
    %v377 = vadd.f32 %v372, %v374
    %v378 = vmax.f32 %v375, 0.0
    %v379 = vmax.f32 %v376, 0.0
    %v380 = vmax.f32 %v377, 0.0
    %v382 = vlaneseq
    %v383 = vshrl.u32 %v382, 7
    %v384 = vsub.s32 0, %v383
    %v385 = vrot.slane %v60, %v384
    %v386 = vlaneseq
    %v387 = vshrl.u32 %v386, 7
    %v388 = vsub.s32 1, %v387
    %v389 = vrot.slane %v60, %v388
    %v390 = vlaneseq
    %v391 = vshrl.u32 %v390, 7
    %v392 = vsub.s32 2, %v391
    %v393 = vrot.slane %v60, %v392
    %v397 = vmul.f32 %v378, %v385
    %v398 = vmul.f32 %v379, %v389
    %v399 = vmul.f32 %v380, %v393
    %v400 = vadd.f32 %v397, %v398
    %vm401 = vcmask 556032
    %v402 = vsel %vm401, %v399, 0.0
    %v403 = vadd.f32 %v400, %v402
    %404 = vadd.xlane.f32.xlu0 %v403
    %v405 = vpop.xlane.xlu0 %404
    %v406 = vlaneseq
    %v407 = vshrl.u32 %v406, 7
    %v408 = vsub.s32 0, %v407
    %v409 = vrot.slane %v58, %v408
    %v410 = vmul.f32 %v405, %v409
    %v411 = vadd.f32 %v64, %v410
    %s412 = sld [smem:[#allocation7 + $0x80]]
    %v413 = vstv %s412
    %v414 = vmul.f32 %v181, %v413
    %v415 = vmul.f32 %v182, %v413
    %v416 = vmul.f32 %v183, %v413
    %s417 = sld [smem:[#allocation7 + $0x81]]
    %v418 = vstv %s417
    %v419 = vmul.f32 %v181, %v418
    %v420 = vmul.f32 %v182, %v418
    %v421 = vmul.f32 %v183, %v418
    %425 = vrot.lane.b32.xlu0 %v419, 127
    %v426 = vpop.permute.xlu0 %425
    %427 = vrot.lane.b32.xlu0 %v420, 127
    %v428 = vpop.permute.xlu0 %427
    %429 = vrot.lane.b32.xlu0 %v421, 127
    %v430 = vpop.permute.xlu0 %429
    %v431 = vsel %vm203, %v426, %v428
    %v432 = vsel %vm203, %v428, %v430
    %v436 = vadd.f32 %v414, %v431
    %v437 = vadd.f32 %v415, %v432
    %v438 = vadd.f32 %v416, %v430
    %s439 = sld [smem:[#allocation7 + $0x82]]
    %v440 = vstv %s439
    %v441 = vmul.f32 %v181, %v440
    %v442 = vmul.f32 %v182, %v440
    %v443 = vmul.f32 %v183, %v440
    %447 = vrot.lane.b32.xlu0 %v441, 126
    %v448 = vpop.permute.xlu0 %447
    %449 = vrot.lane.b32.xlu0 %v442, 126
    %v450 = vpop.permute.xlu0 %449
    %451 = vrot.lane.b32.xlu0 %v443, 126
    %v452 = vpop.permute.xlu0 %451
    %v453 = vsel %vm226, %v448, %v450
    %v454 = vsel %vm226, %v450, %v452
    %v458 = vadd.f32 %v436, %v453
    %v459 = vadd.f32 %v437, %v454
    %v460 = vadd.f32 %v438, %v452
    %s461 = sld [smem:[#allocation7 + $0x83]]
    %v462 = vstv %s461
    %v463 = vmul.f32 %v181, %v462
    %v464 = vmul.f32 %v182, %v462
    %v465 = vmul.f32 %v183, %v462
    %469 = vrot.lane.b32.xlu0 %v463, 110
    %v470 = vpop.permute.xlu0 %469
    %471 = vrot.lane.b32.xlu0 %v464, 110
    %v472 = vpop.permute.xlu0 %471
    %473 = vrot.lane.b32.xlu0 %v465, 110
    %v474 = vpop.permute.xlu0 %473
    %v475 = vsel %vm249, %v470, %v472
    %v476 = vsel %vm249, %v472, %v474
    %v480 = vadd.f32 %v458, %v475
    %v481 = vadd.f32 %v459, %v476
    %v482 = vadd.f32 %v460, %v474
    %s483 = sld [smem:[#allocation7 + $0x84]]
    %v484 = vstv %s483
    %v485 = vmul.f32 %v181, %v484
    %v486 = vmul.f32 %v182, %v484
    %v487 = vmul.f32 %v183, %v484
    %491 = vrot.lane.b32.xlu0 %v485, 109
    %v492 = vpop.permute.xlu0 %491
    %493 = vrot.lane.b32.xlu0 %v486, 109
    %v494 = vpop.permute.xlu0 %493
    %495 = vrot.lane.b32.xlu0 %v487, 109
    %v496 = vpop.permute.xlu0 %495
    %v497 = vsel %vm272, %v492, %v494
    %v498 = vsel %vm272, %v494, %v496
    %v502 = vadd.f32 %v480, %v497
    %v503 = vadd.f32 %v481, %v498
    %v504 = vadd.f32 %v482, %v496
    %s505 = sld [smem:[#allocation7 + $0x85]]
    %v506 = vstv %s505
    %v507 = vmul.f32 %v181, %v506
    %v508 = vmul.f32 %v182, %v506
    %v509 = vmul.f32 %v183, %v506
    %513 = vrot.lane.b32.xlu0 %v507, 108
    %v514 = vpop.permute.xlu0 %513
    %515 = vrot.lane.b32.xlu0 %v508, 108
    %v516 = vpop.permute.xlu0 %515
    %517 = vrot.lane.b32.xlu0 %v509, 108
    %v518 = vpop.permute.xlu0 %517
    %v519 = vsel %vm295, %v514, %v516
    %v520 = vsel %vm295, %v516, %v518
    %v524 = vadd.f32 %v502, %v519
    %v525 = vadd.f32 %v503, %v520
    %v526 = vadd.f32 %v504, %v518
    %s527 = sld [smem:[#allocation7 + $0x86]]
    %v528 = vstv %s527
    %v529 = vmul.f32 %v181, %v528
    %v530 = vmul.f32 %v182, %v528
    %v531 = vmul.f32 %v183, %v528
    %535 = vrot.lane.b32.xlu0 %v529, 92
    %v536 = vpop.permute.xlu0 %535
    %537 = vrot.lane.b32.xlu0 %v530, 92
    %v538 = vpop.permute.xlu0 %537
    %539 = vrot.lane.b32.xlu0 %v531, 92
    %v540 = vpop.permute.xlu0 %539
    %v541 = vsel %vm318, %v536, %v538
    %v542 = vsel %vm318, %v538, %v540
    %v546 = vadd.f32 %v524, %v541
    %v547 = vadd.f32 %v525, %v542
    %v548 = vadd.f32 %v526, %v540
    %s549 = sld [smem:[#allocation7 + $0x87]]
    %v550 = vstv %s549
    %v551 = vmul.f32 %v181, %v550
    %v552 = vmul.f32 %v182, %v550
    %v553 = vmul.f32 %v183, %v550
    %557 = vrot.lane.b32.xlu0 %v551, 91
    %v558 = vpop.permute.xlu0 %557
    %559 = vrot.lane.b32.xlu0 %v552, 91
    %v560 = vpop.permute.xlu0 %559
    %561 = vrot.lane.b32.xlu0 %v553, 91
    %v562 = vpop.permute.xlu0 %561
    %v563 = vsel %vm341, %v558, %v560
    %v564 = vsel %vm341, %v560, %v562
    %v568 = vadd.f32 %v546, %v563
    %v569 = vadd.f32 %v547, %v564
    %v570 = vadd.f32 %v548, %v562
    %s571 = sld [smem:[#allocation7 + $0x88]]
    %v572 = vstv %s571
    %v573 = vmul.f32 %v181, %v572
    %v574 = vmul.f32 %v182, %v572
    %v575 = vmul.f32 %v183, %v572
    %579 = vrot.lane.b32.xlu0 %v573, 90
    %v580 = vpop.permute.xlu0 %579
    %581 = vrot.lane.b32.xlu0 %v574, 90
    %v582 = vpop.permute.xlu0 %581
    %583 = vrot.lane.b32.xlu0 %v575, 90
    %v584 = vpop.permute.xlu0 %583
    %v585 = vsel %vm364, %v580, %v582
    %v586 = vsel %vm364, %v582, %v584
    %v590 = vadd.f32 %v568, %v585
    %v591 = vadd.f32 %v569, %v586
    %v592 = vadd.f32 %v570, %v584
    %s593 = sld [smem:[#allocation7 + $0x89]]
    %v594 = vstv %s593
    %v595 = vadd.f32 %v590, %v594
    %v596 = vadd.f32 %v591, %v594
    %v597 = vadd.f32 %v592, %v594
    %v598 = vmax.f32 %v595, 0.0
    %v599 = vmax.f32 %v596, 0.0
    %v600 = vmax.f32 %v597, 0.0
    %v601 = vmul.f32 %v598, %v385
    %v602 = vmul.f32 %v599, %v389
    %v603 = vmul.f32 %v600, %v393
    %v604 = vadd.f32 %v601, %v602
    %v605 = vsel %vm401, %v603, 0.0
    %v606 = vadd.f32 %v604, %v605
    %607 = vadd.xlane.f32.xlu0 %v606
    %v608 = vpop.xlane.xlu0 %607
    %v609 = vlaneseq
    %v610 = vshrl.u32 %v609, 7
    %v611 = vsub.s32 1, %v610
    %v612 = vrot.slane %v58, %v611
    %v613 = vmul.f32 %v608, %v612
    %v614 = vadd.f32 %v411, %v613
    %s615 = sld [smem:[#allocation7 + $0x100]]
    %v616 = vstv %s615
    %v617 = vmul.f32 %v181, %v616
    %v618 = vmul.f32 %v182, %v616
    %v619 = vmul.f32 %v183, %v616
    %s620 = sld [smem:[#allocation7 + $0x101]]
    %v621 = vstv %s620
    %v622 = vmul.f32 %v181, %v621
    %v623 = vmul.f32 %v182, %v621
    %v624 = vmul.f32 %v183, %v621
    %628 = vrot.lane.b32.xlu0 %v622, 127
    %v629 = vpop.permute.xlu0 %628
    %630 = vrot.lane.b32.xlu0 %v623, 127
    %v631 = vpop.permute.xlu0 %630
    %632 = vrot.lane.b32.xlu0 %v624, 127
    %v633 = vpop.permute.xlu0 %632
    %v634 = vsel %vm203, %v629, %v631
    %v635 = vsel %vm203, %v631, %v633
    %v639 = vadd.f32 %v617, %v634
    %v640 = vadd.f32 %v618, %v635
    %v641 = vadd.f32 %v619, %v633
    %s642 = sld [smem:[#allocation7 + $0x102]]
    %v643 = vstv %s642
    %v644 = vmul.f32 %v181, %v643
    %v645 = vmul.f32 %v182, %v643
    %v646 = vmul.f32 %v183, %v643
    %650 = vrot.lane.b32.xlu0 %v644, 126
    %v651 = vpop.permute.xlu0 %650
    %652 = vrot.lane.b32.xlu0 %v645, 126
    %v653 = vpop.permute.xlu0 %652
    %654 = vrot.lane.b32.xlu0 %v646, 126
    %v655 = vpop.permute.xlu0 %654
    %v656 = vsel %vm226, %v651, %v653
    %v657 = vsel %vm226, %v653, %v655
    %v661 = vadd.f32 %v639, %v656
    %v662 = vadd.f32 %v640, %v657
    %v663 = vadd.f32 %v641, %v655
    %s664 = sld [smem:[#allocation7 + $0x103]]
    %v665 = vstv %s664
    %v666 = vmul.f32 %v181, %v665
    %v667 = vmul.f32 %v182, %v665
    %v668 = vmul.f32 %v183, %v665
    %672 = vrot.lane.b32.xlu0 %v666, 110
    %v673 = vpop.permute.xlu0 %672
    %674 = vrot.lane.b32.xlu0 %v667, 110
    %v675 = vpop.permute.xlu0 %674
    %676 = vrot.lane.b32.xlu0 %v668, 110
    %v677 = vpop.permute.xlu0 %676
    %v678 = vsel %vm249, %v673, %v675
    %v679 = vsel %vm249, %v675, %v677
    %v683 = vadd.f32 %v661, %v678
    %v684 = vadd.f32 %v662, %v679
    %v685 = vadd.f32 %v663, %v677
    %s686 = sld [smem:[#allocation7 + $0x104]]
    %v687 = vstv %s686
    %v688 = vmul.f32 %v181, %v687
    %v689 = vmul.f32 %v182, %v687
    %v690 = vmul.f32 %v183, %v687
    %694 = vrot.lane.b32.xlu0 %v688, 109
    %v695 = vpop.permute.xlu0 %694
    %696 = vrot.lane.b32.xlu0 %v689, 109
    %v697 = vpop.permute.xlu0 %696
    %698 = vrot.lane.b32.xlu0 %v690, 109
    %v699 = vpop.permute.xlu0 %698
    %v700 = vsel %vm272, %v695, %v697
    %v701 = vsel %vm272, %v697, %v699
    %v705 = vadd.f32 %v683, %v700
    %v706 = vadd.f32 %v684, %v701
    %v707 = vadd.f32 %v685, %v699
    %s708 = sld [smem:[#allocation7 + $0x105]]
    %v709 = vstv %s708
    %v710 = vmul.f32 %v181, %v709
    %v711 = vmul.f32 %v182, %v709
    %v712 = vmul.f32 %v183, %v709
    %716 = vrot.lane.b32.xlu0 %v710, 108
    %v717 = vpop.permute.xlu0 %716
    %718 = vrot.lane.b32.xlu0 %v711, 108
    %v719 = vpop.permute.xlu0 %718
    %720 = vrot.lane.b32.xlu0 %v712, 108
    %v721 = vpop.permute.xlu0 %720
    %v722 = vsel %vm295, %v717, %v719
    %v723 = vsel %vm295, %v719, %v721
    %v727 = vadd.f32 %v705, %v722
    %v728 = vadd.f32 %v706, %v723
    %v729 = vadd.f32 %v707, %v721
    %s730 = sld [smem:[#allocation7 + $0x106]]
    %v731 = vstv %s730
    %v732 = vmul.f32 %v181, %v731
    %v733 = vmul.f32 %v182, %v731
    %v734 = vmul.f32 %v183, %v731
    %738 = vrot.lane.b32.xlu0 %v732, 92
    %v739 = vpop.permute.xlu0 %738
    %740 = vrot.lane.b32.xlu0 %v733, 92
    %v741 = vpop.permute.xlu0 %740
    %742 = vrot.lane.b32.xlu0 %v734, 92
    %v743 = vpop.permute.xlu0 %742
    %v744 = vsel %vm318, %v739, %v741
    %v745 = vsel %vm318, %v741, %v743
    %v749 = vadd.f32 %v727, %v744
    %v750 = vadd.f32 %v728, %v745
    %v751 = vadd.f32 %v729, %v743
    %s752 = sld [smem:[#allocation7 + $0x107]]
    %v753 = vstv %s752
    %v754 = vmul.f32 %v181, %v753
    %v755 = vmul.f32 %v182, %v753
    %v756 = vmul.f32 %v183, %v753
    %760 = vrot.lane.b32.xlu0 %v754, 91
    %v761 = vpop.permute.xlu0 %760
    %762 = vrot.lane.b32.xlu0 %v755, 91
    %v763 = vpop.permute.xlu0 %762
    %764 = vrot.lane.b32.xlu0 %v756, 91
    %v765 = vpop.permute.xlu0 %764
    %v766 = vsel %vm341, %v761, %v763
    %v767 = vsel %vm341, %v763, %v765
    %v771 = vadd.f32 %v749, %v766
    %v772 = vadd.f32 %v750, %v767
    %v773 = vadd.f32 %v751, %v765
    %s774 = sld [smem:[#allocation7 + $0x108]]
    %v775 = vstv %s774
    %v776 = vmul.f32 %v181, %v775
    %v777 = vmul.f32 %v182, %v775
    %v778 = vmul.f32 %v183, %v775
    %782 = vrot.lane.b32.xlu0 %v776, 90
    %v783 = vpop.permute.xlu0 %782
    %784 = vrot.lane.b32.xlu0 %v777, 90
    %v785 = vpop.permute.xlu0 %784
    %786 = vrot.lane.b32.xlu0 %v778, 90
    %v787 = vpop.permute.xlu0 %786
    %v788 = vsel %vm364, %v783, %v785
    %v789 = vsel %vm364, %v785, %v787
    %v793 = vadd.f32 %v771, %v788
    %v794 = vadd.f32 %v772, %v789
    %v795 = vadd.f32 %v773, %v787
    %s796 = sld [smem:[#allocation7 + $0x109]]
    %v797 = vstv %s796
    %v798 = vadd.f32 %v793, %v797
    %v799 = vadd.f32 %v794, %v797
    %v800 = vadd.f32 %v795, %v797
    %v801 = vmax.f32 %v798, 0.0
    %v802 = vmax.f32 %v799, 0.0
    %v803 = vmax.f32 %v800, 0.0
    %v804 = vmul.f32 %v801, %v385
    %v805 = vmul.f32 %v802, %v389
    %v806 = vmul.f32 %v803, %v393
    %v807 = vadd.f32 %v804, %v805
    %v808 = vsel %vm401, %v806, 0.0
    %v809 = vadd.f32 %v807, %v808
    %810 = vadd.xlane.f32.xlu0 %v809
    %v811 = vpop.xlane.xlu0 %810
    %v812 = vlaneseq
    %v813 = vshrl.u32 %v812, 7
    %v814 = vsub.s32 2, %v813
    %v815 = vrot.slane %v58, %v814
    %v816 = vmul.f32 %v811, %v815
    %v817 = vadd.f32 %v614, %v816
    %s818 = sld [smem:[#allocation7 + $0x180]]
    %v819 = vstv %s818
    %v820 = vmul.f32 %v181, %v819
    %v821 = vmul.f32 %v182, %v819
    %v822 = vmul.f32 %v183, %v819
    %s823 = sld [smem:[#allocation7 + $0x181]]
    %v824 = vstv %s823
    %v825 = vmul.f32 %v181, %v824
    %v826 = vmul.f32 %v182, %v824
    %v827 = vmul.f32 %v183, %v824
    %831 = vrot.lane.b32.xlu0 %v825, 127
    %v832 = vpop.permute.xlu0 %831
    %833 = vrot.lane.b32.xlu0 %v826, 127
    %v834 = vpop.permute.xlu0 %833
    %835 = vrot.lane.b32.xlu0 %v827, 127
    %v836 = vpop.permute.xlu0 %835
    %v837 = vsel %vm203, %v832, %v834
    %v838 = vsel %vm203, %v834, %v836
    %v842 = vadd.f32 %v820, %v837
    %v843 = vadd.f32 %v821, %v838
    %v844 = vadd.f32 %v822, %v836
    %s845 = sld [smem:[#allocation7 + $0x182]]
    %v846 = vstv %s845
    %v847 = vmul.f32 %v181, %v846
    %v848 = vmul.f32 %v182, %v846
    %v849 = vmul.f32 %v183, %v846
    %853 = vrot.lane.b32.xlu0 %v847, 126
    %v854 = vpop.permute.xlu0 %853
    %855 = vrot.lane.b32.xlu0 %v848, 126
    %v856 = vpop.permute.xlu0 %855
    %857 = vrot.lane.b32.xlu0 %v849, 126
    %v858 = vpop.permute.xlu0 %857
    %v859 = vsel %vm226, %v854, %v856
    %v860 = vsel %vm226, %v856, %v858
    %v864 = vadd.f32 %v842, %v859
    %v865 = vadd.f32 %v843, %v860
    %v866 = vadd.f32 %v844, %v858
    %s867 = sld [smem:[#allocation7 + $0x183]]
    %v868 = vstv %s867
    %v869 = vmul.f32 %v181, %v868
    %v870 = vmul.f32 %v182, %v868
    %v871 = vmul.f32 %v183, %v868
    %875 = vrot.lane.b32.xlu0 %v869, 110
    %v876 = vpop.permute.xlu0 %875
    %877 = vrot.lane.b32.xlu0 %v870, 110
    %v878 = vpop.permute.xlu0 %877
    %879 = vrot.lane.b32.xlu0 %v871, 110
    %v880 = vpop.permute.xlu0 %879
    %v881 = vsel %vm249, %v876, %v878
    %v882 = vsel %vm249, %v878, %v880
    %v886 = vadd.f32 %v864, %v881
    %v887 = vadd.f32 %v865, %v882
    %v888 = vadd.f32 %v866, %v880
    %s889 = sld [smem:[#allocation7 + $0x184]]
    %v890 = vstv %s889
    %v891 = vmul.f32 %v181, %v890
    %v892 = vmul.f32 %v182, %v890
    %v893 = vmul.f32 %v183, %v890
    %897 = vrot.lane.b32.xlu0 %v891, 109
    %v898 = vpop.permute.xlu0 %897
    %899 = vrot.lane.b32.xlu0 %v892, 109
    %v900 = vpop.permute.xlu0 %899
    %901 = vrot.lane.b32.xlu0 %v893, 109
    %v902 = vpop.permute.xlu0 %901
    %v903 = vsel %vm272, %v898, %v900
    %v904 = vsel %vm272, %v900, %v902
    %v908 = vadd.f32 %v886, %v903
    %v909 = vadd.f32 %v887, %v904
    %v910 = vadd.f32 %v888, %v902
    %s911 = sld [smem:[#allocation7 + $0x185]]
    %v912 = vstv %s911
    %v913 = vmul.f32 %v181, %v912
    %v914 = vmul.f32 %v182, %v912
    %v915 = vmul.f32 %v183, %v912
    %919 = vrot.lane.b32.xlu0 %v913, 108
    %v920 = vpop.permute.xlu0 %919
    %921 = vrot.lane.b32.xlu0 %v914, 108
    %v922 = vpop.permute.xlu0 %921
    %923 = vrot.lane.b32.xlu0 %v915, 108
    %v924 = vpop.permute.xlu0 %923
    %v925 = vsel %vm295, %v920, %v922
    %v926 = vsel %vm295, %v922, %v924
    %v930 = vadd.f32 %v908, %v925
    %v931 = vadd.f32 %v909, %v926
    %v932 = vadd.f32 %v910, %v924
    %s933 = sld [smem:[#allocation7 + $0x186]]
    %v934 = vstv %s933
    %v935 = vmul.f32 %v181, %v934
    %v936 = vmul.f32 %v182, %v934
    %v937 = vmul.f32 %v183, %v934
    %941 = vrot.lane.b32.xlu0 %v935, 92
    %v942 = vpop.permute.xlu0 %941
    %943 = vrot.lane.b32.xlu0 %v936, 92
    %v944 = vpop.permute.xlu0 %943
    %945 = vrot.lane.b32.xlu0 %v937, 92
    %v946 = vpop.permute.xlu0 %945
    %v947 = vsel %vm318, %v942, %v944
    %v948 = vsel %vm318, %v944, %v946
    %v952 = vadd.f32 %v930, %v947
    %v953 = vadd.f32 %v931, %v948
    %v954 = vadd.f32 %v932, %v946
    %s955 = sld [smem:[#allocation7 + $0x187]]
    %v956 = vstv %s955
    %v957 = vmul.f32 %v181, %v956
    %v958 = vmul.f32 %v182, %v956
    %v959 = vmul.f32 %v183, %v956
    %963 = vrot.lane.b32.xlu0 %v957, 91
    %v964 = vpop.permute.xlu0 %963
    %965 = vrot.lane.b32.xlu0 %v958, 91
    %v966 = vpop.permute.xlu0 %965
    %967 = vrot.lane.b32.xlu0 %v959, 91
    %v968 = vpop.permute.xlu0 %967
    %v969 = vsel %vm341, %v964, %v966
    %v970 = vsel %vm341, %v966, %v968
    %v974 = vadd.f32 %v952, %v969
    %v975 = vadd.f32 %v953, %v970
    %v976 = vadd.f32 %v954, %v968
    %s977 = sld [smem:[#allocation7 + $0x188]]
    %v978 = vstv %s977
    %v979 = vmul.f32 %v181, %v978
    %v980 = vmul.f32 %v182, %v978
    %v981 = vmul.f32 %v183, %v978
    %985 = vrot.lane.b32.xlu0 %v979, 90
    %v986 = vpop.permute.xlu0 %985
    %987 = vrot.lane.b32.xlu0 %v980, 90
    %v988 = vpop.permute.xlu0 %987
    %989 = vrot.lane.b32.xlu0 %v981, 90
    %v990 = vpop.permute.xlu0 %989
    %v991 = vsel %vm364, %v986, %v988
    %v992 = vsel %vm364, %v988, %v990
    %v996 = vadd.f32 %v974, %v991
    %v997 = vadd.f32 %v975, %v992
    %v998 = vadd.f32 %v976, %v990
    %s999 = sld [smem:[#allocation7 + $0x189]]
    %v1000 = vstv %s999
    %v1001 = vadd.f32 %v996, %v1000
    %v1002 = vadd.f32 %v997, %v1000
    %v1003 = vadd.f32 %v998, %v1000
    %v1004 = vmax.f32 %v1001, 0.0
    %v1005 = vmax.f32 %v1002, 0.0
    %v1006 = vmax.f32 %v1003, 0.0
    %v1007 = vmul.f32 %v1004, %v385
    %v1008 = vmul.f32 %v1005, %v389
    %v1009 = vmul.f32 %v1006, %v393
    %v1010 = vadd.f32 %v1007, %v1008
    %v1011 = vsel %vm401, %v1009, 0.0
    %v1012 = vadd.f32 %v1010, %v1011
    %1013 = vadd.xlane.f32.xlu0 %v1012
    %v1014 = vpop.xlane.xlu0 %1013
    %v1015 = vlaneseq
    %v1016 = vshrl.u32 %v1015, 7
    %v1017 = vsub.s32 3, %v1016
    %v1018 = vrot.slane %v58, %v1017
    %v1019 = vmul.f32 %v1014, %v1018
    %v1020 = vadd.f32 %v817, %v1019
    %s1021 = sld [smem:[#allocation7 + $0x200]]
    %v1022 = vstv %s1021
    %v1023 = vmul.f32 %v181, %v1022
    %v1024 = vmul.f32 %v182, %v1022
    %v1025 = vmul.f32 %v183, %v1022
    %s1026 = sld [smem:[#allocation7 + $0x201]]
    %v1027 = vstv %s1026
    %v1028 = vmul.f32 %v181, %v1027
    %v1029 = vmul.f32 %v182, %v1027
    %v1030 = vmul.f32 %v183, %v1027
    %1034 = vrot.lane.b32.xlu0 %v1028, 127
    %v1035 = vpop.permute.xlu0 %1034
    %1036 = vrot.lane.b32.xlu0 %v1029, 127
    %v1037 = vpop.permute.xlu0 %1036
    %1038 = vrot.lane.b32.xlu0 %v1030, 127
    %v1039 = vpop.permute.xlu0 %1038
    %v1040 = vsel %vm203, %v1035, %v1037
    %v1041 = vsel %vm203, %v1037, %v1039
    %v1045 = vadd.f32 %v1023, %v1040
    %v1046 = vadd.f32 %v1024, %v1041
    %v1047 = vadd.f32 %v1025, %v1039
    %s1048 = sld [smem:[#allocation7 + $0x202]]
    %v1049 = vstv %s1048
    %v1050 = vmul.f32 %v181, %v1049
    %v1051 = vmul.f32 %v182, %v1049
    %v1052 = vmul.f32 %v183, %v1049
    %1056 = vrot.lane.b32.xlu0 %v1050, 126
    %v1057 = vpop.permute.xlu0 %1056
    %1058 = vrot.lane.b32.xlu0 %v1051, 126
    %v1059 = vpop.permute.xlu0 %1058
    %1060 = vrot.lane.b32.xlu0 %v1052, 126
    %v1061 = vpop.permute.xlu0 %1060
    %v1062 = vsel %vm226, %v1057, %v1059
    %v1063 = vsel %vm226, %v1059, %v1061
    %v1067 = vadd.f32 %v1045, %v1062
    %v1068 = vadd.f32 %v1046, %v1063
    %v1069 = vadd.f32 %v1047, %v1061
    %s1070 = sld [smem:[#allocation7 + $0x203]]
    %v1071 = vstv %s1070
    %v1072 = vmul.f32 %v181, %v1071
    %v1073 = vmul.f32 %v182, %v1071
    %v1074 = vmul.f32 %v183, %v1071
    %1078 = vrot.lane.b32.xlu0 %v1072, 110
    %v1079 = vpop.permute.xlu0 %1078
    %1080 = vrot.lane.b32.xlu0 %v1073, 110
    %v1081 = vpop.permute.xlu0 %1080
    %1082 = vrot.lane.b32.xlu0 %v1074, 110
    %v1083 = vpop.permute.xlu0 %1082
    %v1084 = vsel %vm249, %v1079, %v1081
    %v1085 = vsel %vm249, %v1081, %v1083
    %v1089 = vadd.f32 %v1067, %v1084
    %v1090 = vadd.f32 %v1068, %v1085
    %v1091 = vadd.f32 %v1069, %v1083
    %s1092 = sld [smem:[#allocation7 + $0x204]]
    %v1093 = vstv %s1092
    %v1094 = vmul.f32 %v181, %v1093
    %v1095 = vmul.f32 %v182, %v1093
    %v1096 = vmul.f32 %v183, %v1093
    %1100 = vrot.lane.b32.xlu0 %v1094, 109
    %v1101 = vpop.permute.xlu0 %1100
    %1102 = vrot.lane.b32.xlu0 %v1095, 109
    %v1103 = vpop.permute.xlu0 %1102
    %1104 = vrot.lane.b32.xlu0 %v1096, 109
    %v1105 = vpop.permute.xlu0 %1104
    %v1106 = vsel %vm272, %v1101, %v1103
    %v1107 = vsel %vm272, %v1103, %v1105
    %v1111 = vadd.f32 %v1089, %v1106
    %v1112 = vadd.f32 %v1090, %v1107
    %v1113 = vadd.f32 %v1091, %v1105
    %s1114 = sld [smem:[#allocation7 + $0x205]]
    %v1115 = vstv %s1114
    %v1116 = vmul.f32 %v181, %v1115
    %v1117 = vmul.f32 %v182, %v1115
    %v1118 = vmul.f32 %v183, %v1115
    %1122 = vrot.lane.b32.xlu0 %v1116, 108
    %v1123 = vpop.permute.xlu0 %1122
    %1124 = vrot.lane.b32.xlu0 %v1117, 108
    %v1125 = vpop.permute.xlu0 %1124
    %1126 = vrot.lane.b32.xlu0 %v1118, 108
    %v1127 = vpop.permute.xlu0 %1126
    %v1128 = vsel %vm295, %v1123, %v1125
    %v1129 = vsel %vm295, %v1125, %v1127
    %v1133 = vadd.f32 %v1111, %v1128
    %v1134 = vadd.f32 %v1112, %v1129
    %v1135 = vadd.f32 %v1113, %v1127
    %s1136 = sld [smem:[#allocation7 + $0x206]]
    %v1137 = vstv %s1136
    %v1138 = vmul.f32 %v181, %v1137
    %v1139 = vmul.f32 %v182, %v1137
    %v1140 = vmul.f32 %v183, %v1137
    %1144 = vrot.lane.b32.xlu0 %v1138, 92
    %v1145 = vpop.permute.xlu0 %1144
    %1146 = vrot.lane.b32.xlu0 %v1139, 92
    %v1147 = vpop.permute.xlu0 %1146
    %1148 = vrot.lane.b32.xlu0 %v1140, 92
    %v1149 = vpop.permute.xlu0 %1148
    %v1150 = vsel %vm318, %v1145, %v1147
    %v1151 = vsel %vm318, %v1147, %v1149
    %v1155 = vadd.f32 %v1133, %v1150
    %v1156 = vadd.f32 %v1134, %v1151
    %v1157 = vadd.f32 %v1135, %v1149
    %s1158 = sld [smem:[#allocation7 + $0x207]]
    %v1159 = vstv %s1158
    %v1160 = vmul.f32 %v181, %v1159
    %v1161 = vmul.f32 %v182, %v1159
    %v1162 = vmul.f32 %v183, %v1159
    %1166 = vrot.lane.b32.xlu0 %v1160, 91
    %v1167 = vpop.permute.xlu0 %1166
    %1168 = vrot.lane.b32.xlu0 %v1161, 91
    %v1169 = vpop.permute.xlu0 %1168
    %1170 = vrot.lane.b32.xlu0 %v1162, 91
    %v1171 = vpop.permute.xlu0 %1170
    %v1172 = vsel %vm341, %v1167, %v1169
    %v1173 = vsel %vm341, %v1169, %v1171
    %v1177 = vadd.f32 %v1155, %v1172
    %v1178 = vadd.f32 %v1156, %v1173
    %v1179 = vadd.f32 %v1157, %v1171
    %s1180 = sld [smem:[#allocation7 + $0x208]]
    %v1181 = vstv %s1180
    %v1182 = vmul.f32 %v181, %v1181
    %v1183 = vmul.f32 %v182, %v1181
    %v1184 = vmul.f32 %v183, %v1181
    %1188 = vrot.lane.b32.xlu0 %v1182, 90
    %v1189 = vpop.permute.xlu0 %1188
    %1190 = vrot.lane.b32.xlu0 %v1183, 90
    %v1191 = vpop.permute.xlu0 %1190
    %1192 = vrot.lane.b32.xlu0 %v1184, 90
    %v1193 = vpop.permute.xlu0 %1192
    %v1194 = vsel %vm364, %v1189, %v1191
    %v1195 = vsel %vm364, %v1191, %v1193
    %v1199 = vadd.f32 %v1177, %v1194
    %v1200 = vadd.f32 %v1178, %v1195
    %v1201 = vadd.f32 %v1179, %v1193
    %s1202 = sld [smem:[#allocation7 + $0x209]]
    %v1203 = vstv %s1202
    %v1204 = vadd.f32 %v1199, %v1203
    %v1205 = vadd.f32 %v1200, %v1203
    %v1206 = vadd.f32 %v1201, %v1203
    %v1207 = vmax.f32 %v1204, 0.0
    %v1208 = vmax.f32 %v1205, 0.0
    %v1209 = vmax.f32 %v1206, 0.0
    %v1210 = vmul.f32 %v1207, %v385
    %v1211 = vmul.f32 %v1208, %v389
    %v1212 = vmul.f32 %v1209, %v393
    %v1213 = vadd.f32 %v1210, %v1211
    %v1214 = vsel %vm401, %v1212, 0.0
    %v1215 = vadd.f32 %v1213, %v1214
    %1216 = vadd.xlane.f32.xlu0 %v1215
    %v1217 = vpop.xlane.xlu0 %1216
    %v1218 = vlaneseq
    %v1219 = vshrl.u32 %v1218, 7
    %v1220 = vsub.s32 4, %v1219
    %v1221 = vrot.slane %v58, %v1220
    %v1222 = vmul.f32 %v1217, %v1221
    %v1223 = vadd.f32 %v1020, %v1222
    %s1224 = sld [smem:[#allocation7 + $0x280]]
    %v1225 = vstv %s1224
    %v1226 = vmul.f32 %v181, %v1225
    %v1227 = vmul.f32 %v182, %v1225
    %v1228 = vmul.f32 %v183, %v1225
    %s1229 = sld [smem:[#allocation7 + $0x281]]
    %v1230 = vstv %s1229
    %v1231 = vmul.f32 %v181, %v1230
    %v1232 = vmul.f32 %v182, %v1230
    %v1233 = vmul.f32 %v183, %v1230
    %1237 = vrot.lane.b32.xlu0 %v1231, 127
    %v1238 = vpop.permute.xlu0 %1237
    %1239 = vrot.lane.b32.xlu0 %v1232, 127
    %v1240 = vpop.permute.xlu0 %1239
    %1241 = vrot.lane.b32.xlu0 %v1233, 127
    %v1242 = vpop.permute.xlu0 %1241
    %v1243 = vsel %vm203, %v1238, %v1240
    %v1244 = vsel %vm203, %v1240, %v1242
    %v1248 = vadd.f32 %v1226, %v1243
    %v1249 = vadd.f32 %v1227, %v1244
    %v1250 = vadd.f32 %v1228, %v1242
    %s1251 = sld [smem:[#allocation7 + $0x282]]
    %v1252 = vstv %s1251
    %v1253 = vmul.f32 %v181, %v1252
    %v1254 = vmul.f32 %v182, %v1252
    %v1255 = vmul.f32 %v183, %v1252
    %1259 = vrot.lane.b32.xlu0 %v1253, 126
    %v1260 = vpop.permute.xlu0 %1259
    %1261 = vrot.lane.b32.xlu0 %v1254, 126
    %v1262 = vpop.permute.xlu0 %1261
    %1263 = vrot.lane.b32.xlu0 %v1255, 126
    %v1264 = vpop.permute.xlu0 %1263
    %v1265 = vsel %vm226, %v1260, %v1262
    %v1266 = vsel %vm226, %v1262, %v1264
    %v1270 = vadd.f32 %v1248, %v1265
    %v1271 = vadd.f32 %v1249, %v1266
    %v1272 = vadd.f32 %v1250, %v1264
    %s1273 = sld [smem:[#allocation7 + $0x283]]
    %v1274 = vstv %s1273
    %v1275 = vmul.f32 %v181, %v1274
    %v1276 = vmul.f32 %v182, %v1274
    %v1277 = vmul.f32 %v183, %v1274
    %1281 = vrot.lane.b32.xlu0 %v1275, 110
    %v1282 = vpop.permute.xlu0 %1281
    %1283 = vrot.lane.b32.xlu0 %v1276, 110
    %v1284 = vpop.permute.xlu0 %1283
    %1285 = vrot.lane.b32.xlu0 %v1277, 110
    %v1286 = vpop.permute.xlu0 %1285
    %v1287 = vsel %vm249, %v1282, %v1284
    %v1288 = vsel %vm249, %v1284, %v1286
    %v1292 = vadd.f32 %v1270, %v1287
    %v1293 = vadd.f32 %v1271, %v1288
    %v1294 = vadd.f32 %v1272, %v1286
    %s1295 = sld [smem:[#allocation7 + $0x284]]
    %v1296 = vstv %s1295
    %v1297 = vmul.f32 %v181, %v1296
    %v1298 = vmul.f32 %v182, %v1296
    %v1299 = vmul.f32 %v183, %v1296
    %1303 = vrot.lane.b32.xlu0 %v1297, 109
    %v1304 = vpop.permute.xlu0 %1303
    %1305 = vrot.lane.b32.xlu0 %v1298, 109
    %v1306 = vpop.permute.xlu0 %1305
    %1307 = vrot.lane.b32.xlu0 %v1299, 109
    %v1308 = vpop.permute.xlu0 %1307
    %v1309 = vsel %vm272, %v1304, %v1306
    %v1310 = vsel %vm272, %v1306, %v1308
    %v1314 = vadd.f32 %v1292, %v1309
    %v1315 = vadd.f32 %v1293, %v1310
    %v1316 = vadd.f32 %v1294, %v1308
    %s1317 = sld [smem:[#allocation7 + $0x285]]
    %v1318 = vstv %s1317
    %v1319 = vmul.f32 %v181, %v1318
    %v1320 = vmul.f32 %v182, %v1318
    %v1321 = vmul.f32 %v183, %v1318
    %1325 = vrot.lane.b32.xlu0 %v1319, 108
    %v1326 = vpop.permute.xlu0 %1325
    %1327 = vrot.lane.b32.xlu0 %v1320, 108
    %v1328 = vpop.permute.xlu0 %1327
    %1329 = vrot.lane.b32.xlu0 %v1321, 108
    %v1330 = vpop.permute.xlu0 %1329
    %v1331 = vsel %vm295, %v1326, %v1328
    %v1332 = vsel %vm295, %v1328, %v1330
    %v1336 = vadd.f32 %v1314, %v1331
    %v1337 = vadd.f32 %v1315, %v1332
    %v1338 = vadd.f32 %v1316, %v1330
    %s1339 = sld [smem:[#allocation7 + $0x286]]
    %v1340 = vstv %s1339
    %v1341 = vmul.f32 %v181, %v1340
    %v1342 = vmul.f32 %v182, %v1340
    %v1343 = vmul.f32 %v183, %v1340
    %1347 = vrot.lane.b32.xlu0 %v1341, 92
    %v1348 = vpop.permute.xlu0 %1347
    %1349 = vrot.lane.b32.xlu0 %v1342, 92
    %v1350 = vpop.permute.xlu0 %1349
    %1351 = vrot.lane.b32.xlu0 %v1343, 92
    %v1352 = vpop.permute.xlu0 %1351
    %v1353 = vsel %vm318, %v1348, %v1350
    %v1354 = vsel %vm318, %v1350, %v1352
    %v1358 = vadd.f32 %v1336, %v1353
    %v1359 = vadd.f32 %v1337, %v1354
    %v1360 = vadd.f32 %v1338, %v1352
    %s1361 = sld [smem:[#allocation7 + $0x287]]
    %v1362 = vstv %s1361
    %v1363 = vmul.f32 %v181, %v1362
    %v1364 = vmul.f32 %v182, %v1362
    %v1365 = vmul.f32 %v183, %v1362
    %1369 = vrot.lane.b32.xlu0 %v1363, 91
    %v1370 = vpop.permute.xlu0 %1369
    %1371 = vrot.lane.b32.xlu0 %v1364, 91
    %v1372 = vpop.permute.xlu0 %1371
    %1373 = vrot.lane.b32.xlu0 %v1365, 91
    %v1374 = vpop.permute.xlu0 %1373
    %v1375 = vsel %vm341, %v1370, %v1372
    %v1376 = vsel %vm341, %v1372, %v1374
    %v1380 = vadd.f32 %v1358, %v1375
    %v1381 = vadd.f32 %v1359, %v1376
    %v1382 = vadd.f32 %v1360, %v1374
    %s1383 = sld [smem:[#allocation7 + $0x288]]
    %v1384 = vstv %s1383
    %v1385 = vmul.f32 %v181, %v1384
    %v1386 = vmul.f32 %v182, %v1384
    %v1387 = vmul.f32 %v183, %v1384
    %1391 = vrot.lane.b32.xlu0 %v1385, 90
    %v1392 = vpop.permute.xlu0 %1391
    %1393 = vrot.lane.b32.xlu0 %v1386, 90
    %v1394 = vpop.permute.xlu0 %1393
    %1395 = vrot.lane.b32.xlu0 %v1387, 90
    %v1396 = vpop.permute.xlu0 %1395
    %v1397 = vsel %vm364, %v1392, %v1394
    %v1398 = vsel %vm364, %v1394, %v1396
    %v1402 = vadd.f32 %v1380, %v1397
    %v1403 = vadd.f32 %v1381, %v1398
    %v1404 = vadd.f32 %v1382, %v1396
    %s1405 = sld [smem:[#allocation7 + $0x289]]
    %v1406 = vstv %s1405
    %v1407 = vadd.f32 %v1402, %v1406
    %v1408 = vadd.f32 %v1403, %v1406
    %v1409 = vadd.f32 %v1404, %v1406
    %v1410 = vmax.f32 %v1407, 0.0
    %v1411 = vmax.f32 %v1408, 0.0
    %v1412 = vmax.f32 %v1409, 0.0
    %v1413 = vmul.f32 %v1410, %v385
    %v1414 = vmul.f32 %v1411, %v389
    %v1415 = vmul.f32 %v1412, %v393
    %v1416 = vadd.f32 %v1413, %v1414
    %v1417 = vsel %vm401, %v1415, 0.0
    %v1418 = vadd.f32 %v1416, %v1417
    %1419 = vadd.xlane.f32.xlu0 %v1418
    %v1420 = vpop.xlane.xlu0 %1419
    %v1421 = vlaneseq
    %v1422 = vshrl.u32 %v1421, 7
    %v1423 = vsub.s32 5, %v1422
    %v1424 = vrot.slane %v58, %v1423
    %v1425 = vmul.f32 %v1420, %v1424
    %v1426 = vadd.f32 %v1223, %v1425
    %s1427 = sld [smem:[#allocation7 + $0x300]]
    %v1428 = vstv %s1427
    %v1429 = vmul.f32 %v181, %v1428
    %v1430 = vmul.f32 %v182, %v1428
    %v1431 = vmul.f32 %v183, %v1428
    %s1432 = sld [smem:[#allocation7 + $0x301]]
    %v1433 = vstv %s1432
    %v1434 = vmul.f32 %v181, %v1433
    %v1435 = vmul.f32 %v182, %v1433
    %v1436 = vmul.f32 %v183, %v1433
    %1440 = vrot.lane.b32.xlu0 %v1434, 127
    %v1441 = vpop.permute.xlu0 %1440
    %1442 = vrot.lane.b32.xlu0 %v1435, 127
    %v1443 = vpop.permute.xlu0 %1442
    %1444 = vrot.lane.b32.xlu0 %v1436, 127
    %v1445 = vpop.permute.xlu0 %1444
    %v1446 = vsel %vm203, %v1441, %v1443
    %v1447 = vsel %vm203, %v1443, %v1445
    %v1451 = vadd.f32 %v1429, %v1446
    %v1452 = vadd.f32 %v1430, %v1447
    %v1453 = vadd.f32 %v1431, %v1445
    %s1454 = sld [smem:[#allocation7 + $0x302]]
    %v1455 = vstv %s1454
    %v1456 = vmul.f32 %v181, %v1455
    %v1457 = vmul.f32 %v182, %v1455
    %v1458 = vmul.f32 %v183, %v1455
    %1462 = vrot.lane.b32.xlu0 %v1456, 126
    %v1463 = vpop.permute.xlu0 %1462
    %1464 = vrot.lane.b32.xlu0 %v1457, 126
    %v1465 = vpop.permute.xlu0 %1464
    %1466 = vrot.lane.b32.xlu0 %v1458, 126
    %v1467 = vpop.permute.xlu0 %1466
    %v1468 = vsel %vm226, %v1463, %v1465
    %v1469 = vsel %vm226, %v1465, %v1467
    %v1473 = vadd.f32 %v1451, %v1468
    %v1474 = vadd.f32 %v1452, %v1469
    %v1475 = vadd.f32 %v1453, %v1467
    %s1476 = sld [smem:[#allocation7 + $0x303]]
    %v1477 = vstv %s1476
    %v1478 = vmul.f32 %v181, %v1477
    %v1479 = vmul.f32 %v182, %v1477
    %v1480 = vmul.f32 %v183, %v1477
    %1484 = vrot.lane.b32.xlu0 %v1478, 110
    %v1485 = vpop.permute.xlu0 %1484
    %1486 = vrot.lane.b32.xlu0 %v1479, 110
    %v1487 = vpop.permute.xlu0 %1486
    %1488 = vrot.lane.b32.xlu0 %v1480, 110
    %v1489 = vpop.permute.xlu0 %1488
    %v1490 = vsel %vm249, %v1485, %v1487
    %v1491 = vsel %vm249, %v1487, %v1489
    %v1495 = vadd.f32 %v1473, %v1490
    %v1496 = vadd.f32 %v1474, %v1491
    %v1497 = vadd.f32 %v1475, %v1489
    %s1498 = sld [smem:[#allocation7 + $0x304]]
    %v1499 = vstv %s1498
    %v1500 = vmul.f32 %v181, %v1499
    %v1501 = vmul.f32 %v182, %v1499
    %v1502 = vmul.f32 %v183, %v1499
    %1506 = vrot.lane.b32.xlu0 %v1500, 109
    %v1507 = vpop.permute.xlu0 %1506
    %1508 = vrot.lane.b32.xlu0 %v1501, 109
    %v1509 = vpop.permute.xlu0 %1508
    %1510 = vrot.lane.b32.xlu0 %v1502, 109
    %v1511 = vpop.permute.xlu0 %1510
    %v1512 = vsel %vm272, %v1507, %v1509
    %v1513 = vsel %vm272, %v1509, %v1511
    %v1517 = vadd.f32 %v1495, %v1512
    %v1518 = vadd.f32 %v1496, %v1513
    %v1519 = vadd.f32 %v1497, %v1511
    %s1520 = sld [smem:[#allocation7 + $0x305]]
    %v1521 = vstv %s1520
    %v1522 = vmul.f32 %v181, %v1521
    %v1523 = vmul.f32 %v182, %v1521
    %v1524 = vmul.f32 %v183, %v1521
    %1528 = vrot.lane.b32.xlu0 %v1522, 108
    %v1529 = vpop.permute.xlu0 %1528
    %1530 = vrot.lane.b32.xlu0 %v1523, 108
    %v1531 = vpop.permute.xlu0 %1530
    %1532 = vrot.lane.b32.xlu0 %v1524, 108
    %v1533 = vpop.permute.xlu0 %1532
    %v1534 = vsel %vm295, %v1529, %v1531
    %v1535 = vsel %vm295, %v1531, %v1533
    %v1539 = vadd.f32 %v1517, %v1534
    %v1540 = vadd.f32 %v1518, %v1535
    %v1541 = vadd.f32 %v1519, %v1533
    %s1542 = sld [smem:[#allocation7 + $0x306]]
    %v1543 = vstv %s1542
    %v1544 = vmul.f32 %v181, %v1543
    %v1545 = vmul.f32 %v182, %v1543
    %v1546 = vmul.f32 %v183, %v1543
    %1550 = vrot.lane.b32.xlu0 %v1544, 92
    %v1551 = vpop.permute.xlu0 %1550
    %1552 = vrot.lane.b32.xlu0 %v1545, 92
    %v1553 = vpop.permute.xlu0 %1552
    %1554 = vrot.lane.b32.xlu0 %v1546, 92
    %v1555 = vpop.permute.xlu0 %1554
    %v1556 = vsel %vm318, %v1551, %v1553
    %v1557 = vsel %vm318, %v1553, %v1555
    %v1561 = vadd.f32 %v1539, %v1556
    %v1562 = vadd.f32 %v1540, %v1557
    %v1563 = vadd.f32 %v1541, %v1555
    %s1564 = sld [smem:[#allocation7 + $0x307]]
    %v1565 = vstv %s1564
    %v1566 = vmul.f32 %v181, %v1565
    %v1567 = vmul.f32 %v182, %v1565
    %v1568 = vmul.f32 %v183, %v1565
    %1572 = vrot.lane.b32.xlu0 %v1566, 91
    %v1573 = vpop.permute.xlu0 %1572
    %1574 = vrot.lane.b32.xlu0 %v1567, 91
    %v1575 = vpop.permute.xlu0 %1574
    %1576 = vrot.lane.b32.xlu0 %v1568, 91
    %v1577 = vpop.permute.xlu0 %1576
    %v1578 = vsel %vm341, %v1573, %v1575
    %v1579 = vsel %vm341, %v1575, %v1577
    %v1583 = vadd.f32 %v1561, %v1578
    %v1584 = vadd.f32 %v1562, %v1579
    %v1585 = vadd.f32 %v1563, %v1577
    %s1586 = sld [smem:[#allocation7 + $0x308]]
    %v1587 = vstv %s1586
    %v1588 = vmul.f32 %v181, %v1587
    %v1589 = vmul.f32 %v182, %v1587
    %v1590 = vmul.f32 %v183, %v1587
    %1594 = vrot.lane.b32.xlu0 %v1588, 90
    %v1595 = vpop.permute.xlu0 %1594
    %1596 = vrot.lane.b32.xlu0 %v1589, 90
    %v1597 = vpop.permute.xlu0 %1596
    %1598 = vrot.lane.b32.xlu0 %v1590, 90
    %v1599 = vpop.permute.xlu0 %1598
    %v1600 = vsel %vm364, %v1595, %v1597
    %v1601 = vsel %vm364, %v1597, %v1599
    %v1605 = vadd.f32 %v1583, %v1600
    %v1606 = vadd.f32 %v1584, %v1601
    %v1607 = vadd.f32 %v1585, %v1599
    %s1608 = sld [smem:[#allocation7 + $0x309]]
    %v1609 = vstv %s1608
    %v1610 = vadd.f32 %v1605, %v1609
    %v1611 = vadd.f32 %v1606, %v1609
    %v1612 = vadd.f32 %v1607, %v1609
    %v1613 = vmax.f32 %v1610, 0.0
    %v1614 = vmax.f32 %v1611, 0.0
    %v1615 = vmax.f32 %v1612, 0.0
    %v1616 = vmul.f32 %v1613, %v385
    %v1617 = vmul.f32 %v1614, %v389
    %v1618 = vmul.f32 %v1615, %v393
    %v1619 = vadd.f32 %v1616, %v1617
    %v1620 = vsel %vm401, %v1618, 0.0
    %v1621 = vadd.f32 %v1619, %v1620
    %1622 = vadd.xlane.f32.xlu0 %v1621
    %v1623 = vpop.xlane.xlu0 %1622
    %v1624 = vlaneseq
    %v1625 = vshrl.u32 %v1624, 7
    %v1626 = vsub.s32 6, %v1625
    %v1627 = vrot.slane %v58, %v1626
    %v1628 = vmul.f32 %v1623, %v1627
    %v1629 = vadd.f32 %v1426, %v1628
    %s1630 = sld [smem:[#allocation7 + $0x380]]
    %v1631 = vstv %s1630
    %v1632 = vmul.f32 %v181, %v1631
    %v1633 = vmul.f32 %v182, %v1631
    %v1634 = vmul.f32 %v183, %v1631
    %s1635 = sld [smem:[#allocation7 + $0x381]]
    %v1636 = vstv %s1635
    %v1637 = vmul.f32 %v181, %v1636
    %v1638 = vmul.f32 %v182, %v1636
    %v1639 = vmul.f32 %v183, %v1636
    %1643 = vrot.lane.b32.xlu0 %v1637, 127
    %v1644 = vpop.permute.xlu0 %1643
    %1645 = vrot.lane.b32.xlu0 %v1638, 127
    %v1646 = vpop.permute.xlu0 %1645
    %1647 = vrot.lane.b32.xlu0 %v1639, 127
    %v1648 = vpop.permute.xlu0 %1647
    %v1649 = vsel %vm203, %v1644, %v1646
    %v1650 = vsel %vm203, %v1646, %v1648
    %v1654 = vadd.f32 %v1632, %v1649
    %v1655 = vadd.f32 %v1633, %v1650
    %v1656 = vadd.f32 %v1634, %v1648
    %s1657 = sld [smem:[#allocation7 + $0x382]]
    %v1658 = vstv %s1657
    %v1659 = vmul.f32 %v181, %v1658
    %v1660 = vmul.f32 %v182, %v1658
    %v1661 = vmul.f32 %v183, %v1658
    %1665 = vrot.lane.b32.xlu0 %v1659, 126
    %v1666 = vpop.permute.xlu0 %1665
    %1667 = vrot.lane.b32.xlu0 %v1660, 126
    %v1668 = vpop.permute.xlu0 %1667
    %1669 = vrot.lane.b32.xlu0 %v1661, 126
    %v1670 = vpop.permute.xlu0 %1669
    %v1671 = vsel %vm226, %v1666, %v1668
    %v1672 = vsel %vm226, %v1668, %v1670
    %v1676 = vadd.f32 %v1654, %v1671
    %v1677 = vadd.f32 %v1655, %v1672
    %v1678 = vadd.f32 %v1656, %v1670
    %s1679 = sld [smem:[#allocation7 + $0x383]]
    %v1680 = vstv %s1679
    %v1681 = vmul.f32 %v181, %v1680
    %v1682 = vmul.f32 %v182, %v1680
    %v1683 = vmul.f32 %v183, %v1680
    %1687 = vrot.lane.b32.xlu0 %v1681, 110
    %v1688 = vpop.permute.xlu0 %1687
    %1689 = vrot.lane.b32.xlu0 %v1682, 110
    %v1690 = vpop.permute.xlu0 %1689
    %1691 = vrot.lane.b32.xlu0 %v1683, 110
    %v1692 = vpop.permute.xlu0 %1691
    %v1693 = vsel %vm249, %v1688, %v1690
    %v1694 = vsel %vm249, %v1690, %v1692
    %v1698 = vadd.f32 %v1676, %v1693
    %v1699 = vadd.f32 %v1677, %v1694
    %v1700 = vadd.f32 %v1678, %v1692
    %s1701 = sld [smem:[#allocation7 + $0x384]]
    %v1702 = vstv %s1701
    %v1703 = vmul.f32 %v181, %v1702
    %v1704 = vmul.f32 %v182, %v1702
    %v1705 = vmul.f32 %v183, %v1702
    %1709 = vrot.lane.b32.xlu0 %v1703, 109
    %v1710 = vpop.permute.xlu0 %1709
    %1711 = vrot.lane.b32.xlu0 %v1704, 109
    %v1712 = vpop.permute.xlu0 %1711
    %1713 = vrot.lane.b32.xlu0 %v1705, 109
    %v1714 = vpop.permute.xlu0 %1713
    %v1715 = vsel %vm272, %v1710, %v1712
    %v1716 = vsel %vm272, %v1712, %v1714
    %v1720 = vadd.f32 %v1698, %v1715
    %v1721 = vadd.f32 %v1699, %v1716
    %v1722 = vadd.f32 %v1700, %v1714
    %s1723 = sld [smem:[#allocation7 + $0x385]]
    %v1724 = vstv %s1723
    %v1725 = vmul.f32 %v181, %v1724
    %v1726 = vmul.f32 %v182, %v1724
    %v1727 = vmul.f32 %v183, %v1724
    %1731 = vrot.lane.b32.xlu0 %v1725, 108
    %v1732 = vpop.permute.xlu0 %1731
    %1733 = vrot.lane.b32.xlu0 %v1726, 108
    %v1734 = vpop.permute.xlu0 %1733
    %1735 = vrot.lane.b32.xlu0 %v1727, 108
    %v1736 = vpop.permute.xlu0 %1735
    %v1737 = vsel %vm295, %v1732, %v1734
    %v1738 = vsel %vm295, %v1734, %v1736
    %v1742 = vadd.f32 %v1720, %v1737
    %v1743 = vadd.f32 %v1721, %v1738
    %v1744 = vadd.f32 %v1722, %v1736
    %s1745 = sld [smem:[#allocation7 + $0x386]]
    %v1746 = vstv %s1745
    %v1747 = vmul.f32 %v181, %v1746
    %v1748 = vmul.f32 %v182, %v1746
    %v1749 = vmul.f32 %v183, %v1746
    %1753 = vrot.lane.b32.xlu0 %v1747, 92
    %v1754 = vpop.permute.xlu0 %1753
    %1755 = vrot.lane.b32.xlu0 %v1748, 92
    %v1756 = vpop.permute.xlu0 %1755
    %1757 = vrot.lane.b32.xlu0 %v1749, 92
    %v1758 = vpop.permute.xlu0 %1757
    %v1759 = vsel %vm318, %v1754, %v1756
    %v1760 = vsel %vm318, %v1756, %v1758
    %v1764 = vadd.f32 %v1742, %v1759
    %v1765 = vadd.f32 %v1743, %v1760
    %v1766 = vadd.f32 %v1744, %v1758
    %s1767 = sld [smem:[#allocation7 + $0x387]]
    %v1768 = vstv %s1767
    %v1769 = vmul.f32 %v181, %v1768
    %v1770 = vmul.f32 %v182, %v1768
    %v1771 = vmul.f32 %v183, %v1768
    %1775 = vrot.lane.b32.xlu0 %v1769, 91
    %v1776 = vpop.permute.xlu0 %1775
    %1777 = vrot.lane.b32.xlu0 %v1770, 91
    %v1778 = vpop.permute.xlu0 %1777
    %1779 = vrot.lane.b32.xlu0 %v1771, 91
    %v1780 = vpop.permute.xlu0 %1779
    %v1781 = vsel %vm341, %v1776, %v1778
    %v1782 = vsel %vm341, %v1778, %v1780
    %v1786 = vadd.f32 %v1764, %v1781
    %v1787 = vadd.f32 %v1765, %v1782
    %v1788 = vadd.f32 %v1766, %v1780
    %s1789 = sld [smem:[#allocation7 + $0x388]]
    %v1790 = vstv %s1789
    %v1791 = vmul.f32 %v181, %v1790
    %v1792 = vmul.f32 %v182, %v1790
    %v1793 = vmul.f32 %v183, %v1790
    %1797 = vrot.lane.b32.xlu0 %v1791, 90
    %v1798 = vpop.permute.xlu0 %1797
    %1799 = vrot.lane.b32.xlu0 %v1792, 90
    %v1800 = vpop.permute.xlu0 %1799
    %1801 = vrot.lane.b32.xlu0 %v1793, 90
    %v1802 = vpop.permute.xlu0 %1801
    %v1803 = vsel %vm364, %v1798, %v1800
    %v1804 = vsel %vm364, %v1800, %v1802
    %v1808 = vadd.f32 %v1786, %v1803
    %v1809 = vadd.f32 %v1787, %v1804
    %v1810 = vadd.f32 %v1788, %v1802
    %s1811 = sld [smem:[#allocation7 + $0x389]]
    %v1812 = vstv %s1811
    %v1813 = vadd.f32 %v1808, %v1812
    %v1814 = vadd.f32 %v1809, %v1812
    %v1815 = vadd.f32 %v1810, %v1812
    %v1816 = vmax.f32 %v1813, 0.0
    %v1817 = vmax.f32 %v1814, 0.0
    %v1818 = vmax.f32 %v1815, 0.0
    %v1819 = vmul.f32 %v1816, %v385
    %v1820 = vmul.f32 %v1817, %v389
    %v1821 = vmul.f32 %v1818, %v393
    %v1822 = vadd.f32 %v1819, %v1820
    %v1823 = vsel %vm401, %v1821, 0.0
    %v1824 = vadd.f32 %v1822, %v1823
    %1825 = vadd.xlane.f32.xlu0 %v1824
    %v1826 = vpop.xlane.xlu0 %1825
    %v1827 = vlaneseq
    %v1828 = vshrl.u32 %v1827, 7
    %v1829 = vsub.s32 7, %v1828
    %v1830 = vrot.slane %v58, %v1829
    %v1831 = vmul.f32 %v1826, %v1830
    %v1832 = vadd.f32 %v1629, %v1831
    %1833 = vst [vmem:[#allocation10] sm:$0xff] %v1832
    // Predicated region
    $region30: #{tpu_custom_call.1} parent=1 // pred_check
      _
    $region31: #{tpu_custom_call.1} parent=1 // pred_check_branch
      %1835 = sbr.rel (0) target = $region33
    $region32: #{tpu_custom_call.1} parent=1 // pred_region
      %s1837 = ssub.s32 128, 128
      %1838 = vsyncadd [#allocation5], %s1837
      %s1840 = sshll.u32 [#allocation10], 4
      %s1841 = int_to_ptr.vmem [resolvable:$true] %s1840
      %1843 = dma.vmem_to_hbm [thread:$0]  %s1841, 128, %s4, [#allocation5]
    $region33: #{tpu_custom_call.1} parent=1 // pred_fallthru
      _
    // Predicated region
    $region34: #{tpu_custom_call.1} parent=1 // pred_check
      _
    $region35: #{tpu_custom_call.1} parent=1 // pred_check_branch
      %1845 = sbr.rel (0) target = $region37
    $region36: #{tpu_custom_call.1} parent=1 // pred_region
      %1846 = dma.done [#allocation5], 128
    $region37: #{tpu_custom_call.1} parent=1 // pred_fallthru
      _
    %1847 = vsyncpa [#allocation4], 1
    %1848 = vsyncpa [#allocation9], 1
    %1849 = vsyncpa [#allocation5], 1
    %1850 = vsyncpa [#allocation6], 1

</llo_original>
